<compile_context>
chip_gen: v7x
topology: tpu7x:2x2x1
jax: 0.10.0
libtpu: 0.0.40
codegen_flags: <defaults>
</compile_context>

<pallas_src>
import math
import jax
import jax.numpy as jnp
from jax import lax
from jax.experimental import pallas as pl
from jax.experimental.pallas import tpu as pltpu

# ---- small, module-consistent shapes ---------------------------------------
B = 8        # pairs per step-batch
DP = 32      # raw protein feature dim (encoder input)
DM = 32      # raw compound feature dim (encoder input)
H = 128      # hidden_channels
NP = 64      # train protein avg embeddings   (< emb_part_num -> single chunk)
NM = 64      # train compound avg embeddings  (< emb_part_num -> single chunk)
NTOT = NM + NP           # 128 -> lane-dense score block
K = 8        # sim_top_k
INV_SQRT_H = 1.0 / math.sqrt(H)
NEG = -3.0e38            # plain Python literal (finite, exp underflows to 0)
TIE_EPS = 1e-6           # per-column tie-break bias (selection only)

# f32 weight pack row offsets: [w_pe; w_ce; w_pq; w_mq; K^T]
_O_PE = 0
_O_CE = DP
_O_Q = 2 * DP                 # 64
_O_KT = _O_Q + 2 * H          # 320
_WF_ROWS = _O_KT + H          # 448
# bf16 weight pack row offsets: [w_p1a; w_p1b; w_m1a; w_m1b; w_p2; w_m2; V]
_O_W1 = 0
_O_W2 = 4 * H                 # 512
_O_V = 6 * H                  # 768
_WB_ROWS = _O_V + NTOT        # 896


def pair_model_kernel(prot_ref, comp_ref, wf_ref, wb_ref, bias_ref, out_ref):
    # prot_ref: (1, B, DP) f32   comp_ref: (1, B, DM) f32   (per grid step)
    # wf_ref  : (448, H) f32  resident  [w_pe; w_ce; w_pq; w_mq; K^T]
    # wb_ref  : (896, H) bf16 resident  [w_p1(:H); w_p1(H:); w_m1(:H); w_m1(H:); w_p2; w_m2; V]
    # bias_ref: (4, 2B, H) f32 resident per-row bias slabs [enc, q, mlp1, mlp2]
    # out_ref : (1, B, H) f32  lane-dense slab; adj broadcast across lanes
    prot = prot_ref[0]                       # (B, DP)
    comp = comp_ref[0]                       # (B, DM)
    bias = bias_ref[...]                     # (4, 2B, H)
    b_e, b_q, b_1, b_2 = bias[0], bias[1], bias[2], bias[3]

    # ---- encoders (f32; keeps top-K selection faithful to reference) -------
    prot_emb = jnp.dot(prot, wf_ref[_O_PE:_O_CE, :],
                       preferred_element_type=jnp.float32) + b_e[0:B, :]      # (B, H)
    comp_emb = jnp.dot(comp, wf_ref[_O_CE:_O_Q, :],
                       preferred_element_type=jnp.float32) + b_e[B:, :]       # (B, H)

    zf = jnp.zeros((B, H), jnp.float32)

    # ---- fused q projection: block-diagonal LHS @ [w_pq; w_mq] (f32) -------
    lhs_q = jnp.concatenate(
        [jnp.concatenate([prot_emb, zf], axis=1),
         jnp.concatenate([zf, comp_emb], axis=1)], axis=0)                    # (2B, 2H)
    q = jnp.dot(lhs_q, wf_ref[_O_Q:_O_KT, :],
                preferred_element_type=jnp.float32) + b_q                     # (2B, H)

    # ---- scores vs pre-transposed stacked K table (f32, no in-kernel T) ----
    scores = jnp.dot(q, wf_ref[_O_KT:_WF_ROWS, :],
                     preferred_element_type=jnp.float32)                      # (2B, NTOT)

    r = lax.broadcasted_iota(jnp.int32, scores.shape, 0)
    c = lax.broadcasted_iota(jnp.int32, scores.shape, 1)
    # prot rows (0..B-1) attend compound table (cols 0..NM-1); comp rows the prot table
    valid = (r < B) == (c < NM)

    # ---- top-K: one lane-reduce per pick; column bias breaks ties ----------
    work = jnp.where(valid, scores, NEG) - c.astype(jnp.float32) * TIE_EPS
    mask = jnp.zeros(scores.shape, dtype=jnp.bool_)
    for _ in range(K):                        # K static -> unrolled
        cur_max = jnp.max(work, axis=1, keepdims=True)
        sel = work == cur_max
        mask = jnp.logical_or(mask, sel)
        work = jnp.where(sel, NEG, work)

    # ---- masked softmax over original scores, attn @ V (bf16 MXU) ----------
    masked = jnp.where(mask, scores * INV_SQRT_H, NEG)
    m = jnp.max(masked, axis=1, keepdims=True)
    p_un = jnp.where(mask, jnp.exp(masked - m), 0.0)
    denom = jnp.sum(p_un, axis=1, keepdims=True)
    attn = p_un * pl.reciprocal(denom, approx=True)                           # (2B, NTOT)
    sim = jnp.dot(attn.astype(jnp.bfloat16), wb_ref[_O_V:_WB_ROWS, :],
                  preferred_element_type=jnp.float32)                         # (2B, H)
    sim_p = sim[0:B, :]       # prot branch (sim_pm)
    sim_m = sim[B:, :]        # comp branch (sim_mp)

    # ---- out MLPs: ONE fused (2B,4H)@(4H,H), ReLU, ONE (2B,2H)@(2H,H) ------
    lhs1 = jnp.concatenate(
        [jnp.concatenate([prot_emb, sim_p, zf, zf], axis=1),
         jnp.concatenate([zf, zf, comp_emb, sim_m], axis=1)],
        axis=0).astype(jnp.bfloat16)                                          # (2B, 4H)
    h = jnp.maximum(
        jnp.dot(lhs1, wb_ref[_O_W1:_O_W2, :],
                preferred_element_type=jnp.float32) + b_1, 0.0)               # (2B, H)
    lhs2 = jnp.concatenate(
        [jnp.concatenate([h[0:B, :], zf], axis=1),
         jnp.concatenate([zf, h[B:, :]], axis=1)],
        axis=0).astype(jnp.bfloat16)                                          # (2B, 2H)
    out2 = jnp.dot(lhs2, wb_ref[_O_W2:_O_V, :],
                   preferred_element_type=jnp.float32) + b_2                  # (2B, H)

    # ---- F.normalize (p=2, dim=1, eps=1e-12) + cosine -> [0, 1] ------------
    sq = jnp.sum(out2 * out2, axis=1, keepdims=True)
    inv = lax.rsqrt(jnp.maximum(sq, 1e-24))          # == 1 / max(||x||, 1e-12)
    normed = out2 * inv
    adj = (jnp.sum(normed[0:B, :] * normed[B:, :], axis=1, keepdims=True) + 1.0) * 0.5
    out_ref[0] = jnp.broadcast_to(adj, (B, H))       # lane-dense store


# ---------------- host-side packing (done ONCE: weights & tables are static) -
def pack_static(p, prot_train, comp_train):
    # constant K/V projections of the train tables (precomputed outside kernel)
    prot_k = prot_train @ p["w_pk"] + p["b_pk"]
    prot_v = prot_train @ p["w_pv"] + p["b_pv"]
    comp_k = comp_train @ p["w_mk"] + p["b_mk"]
    comp_v = comp_train @ p["w_mv"] + p["b_mv"]
    k_stack = jnp.concatenate([comp_k, prot_k], axis=0)     # prot rows use cols 0..NM-1
    v_stack = jnp.concatenate([comp_v, prot_v], axis=0)

    Wf32 = jnp.zeros((_WF_ROWS, H), jnp.float32)
    Wf32 = Wf32.at[_O_PE:_O_CE].set(p["w_pe"])
    Wf32 = Wf32.at[_O_CE:_O_Q].set(p["w_ce"])
    Wf32 = Wf32.at[_O_Q:_O_Q + H].set(p["w_pq"])
    Wf32 = Wf32.at[_O_Q + H:_O_KT].set(p["w_mq"])
    Wf32 = Wf32.at[_O_KT:_WF_ROWS].set(k_stack.T)           # pre-transposed K table

    Wb = jnp.zeros((_WB_ROWS, H), jnp.float32)
    Wb = Wb.at[_O_W1 + 0 * H:_O_W1 + 1 * H].set(p["w_p1"][0:H])
    Wb = Wb.at[_O_W1 + 1 * H:_O_W1 + 2 * H].set(p["w_p1"][H:2 * H])
    Wb = Wb.at[_O_W1 + 2 * H:_O_W1 + 3 * H].set(p["w_m1"][0:H])
    Wb = Wb.at[_O_W1 + 3 * H:_O_W1 + 4 * H].set(p["w_m1"][H:2 * H])
    Wb = Wb.at[_O_W2:_O_W2 + H].set(p["w_p2"])
    Wb = Wb.at[_O_W2 + H:_O_V].set(p["w_m2"])
    Wb = Wb.at[_O_V:_WB_ROWS].set(v_stack)
    Wbf16 = Wb.astype(jnp.bfloat16)

    BiasPack = jnp.zeros((4, 2 * B, H), jnp.float32)
    for i, (pn, mn) in enumerate([("b_pe", "b_ce"), ("b_pq", "b_mq"),
                                  ("b_p1", "b_m1"), ("b_p2", "b_m2")]):
        BiasPack = BiasPack.at[i, 0:B].set(jnp.broadcast_to(p[pn], (B, H)))
        BiasPack = BiasPack.at[i, B:].set(jnp.broadcast_to(p[mn], (B, H)))
    return Wf32, Wbf16, BiasPack


def pair_model_forward(prot_data, comp_data, Wf32, Wbf16, BiasPack):
    # prot_data: (S, B, DP) f32 ; comp_data: (S, B, DM) f32 ; returns (S, B)
    S = prot_data.shape[0]
    out = pl.pallas_call(
        pair_model_kernel,
        out_shape=jax.ShapeDtypeStruct((S, B, H), jnp.float32),
        grid_spec=pltpu.PrefetchScalarGridSpec(
            num_scalar_prefetch=0,
            grid=(S,),
            in_specs=[
                pl.BlockSpec((1, B, DP), lambda s: (s, 0, 0)),        # streamed
                pl.BlockSpec((1, B, DM), lambda s: (s, 0, 0)),        # streamed
                pl.BlockSpec((_WF_ROWS, H), lambda s: (0, 0)),        # VMEM-resident
                pl.BlockSpec((_WB_ROWS, H), lambda s: (0, 0)),        # VMEM-resident
                pl.BlockSpec((4, 2 * B, H), lambda s: (0, 0, 0)),     # VMEM-resident
            ],
            out_specs=pl.BlockSpec((1, B, H), lambda s: (s, 0, 0)),
        ),
        compiler_params=pltpu.CompilerParams(dimension_semantics=("parallel",)),
    )(prot_data, comp_data, Wf32, Wbf16, BiasPack)
    return out[:, :, 0]                                               # adj_pred (S, B)


# ---------------- pure-JAX reference (uses lax.top_k + gather) ---------------
def _ref_topksim(query, keys, values, k):
    scores = query @ keys.T
    topk, idx = lax.top_k(scores, k)
    topk = topk * INV_SQRT_H
    w = jax.nn.softmax(topk, axis=1)
    topk_emb = jnp.take(values, idx, axis=0)
    return jnp.einsum("bk,bkh->bh", w, topk_emb)


def reference_forward(prot_data, comp_data, prot_train, comp_train, p):
    prot_emb = prot_data @ p["w_pe"] + p["b_pe"]
    comp_emb = comp_data @ p["w_ce"] + p["b_ce"]
    prot_q = prot_emb @ p["w_pq"] + p["b_pq"]
    comp_q = comp_emb @ p["w_mq"] + p["b_mq"]
    prot_k = prot_train @ p["w_pk"] + p["b_pk"]
    comp_k = comp_train @ p["w_mk"] + p["b_mk"]
    prot_v = prot_train @ p["w_pv"] + p["b_pv"]
    comp_v = comp_train @ p["w_mv"] + p["b_mv"]
    sim_mp = _ref_topksim(comp_q, prot_k, prot_v, K)
    sim_pm = _ref_topksim(prot_q, comp_k, comp_v, K)
    prot2 = jnp.concatenate([prot_emb, sim_pm], axis=-1)
    comp2 = jnp.concatenate([comp_emb, sim_mp], axis=-1)
    prot2 = jnp.maximum(prot2 @ p["w_p1"] + p["b_p1"], 0.0) @ p["w_p2"] + p["b_p2"]
    comp2 = jnp.maximum(comp2 @ p["w_m1"] + p["b_m1"], 0.0) @ p["w_m2"] + p["b_m2"]
    pn = prot2 / jnp.maximum(jnp.linalg.norm(prot2, axis=1, keepdims=True), 1e-12)
    cn = comp2 / jnp.maximum(jnp.linalg.norm(comp2, axis=1, keepdims=True), 1e-12)
    return (jnp.sum(pn * cn, axis=1) + 1.0) * 0.5


def make_params(key):
    names_shapes = [
        ("w_pe", (DP, H)), ("b_pe", (1, H)),
        ("w_ce", (DM, H)), ("b_ce", (1, H)),
        ("w_pq", (H, H)), ("b_pq", (1, H)),
        ("w_mq", (H, H)), ("b_mq", (1, H)),
        ("w_pk", (H, H)), ("b_pk", (1, H)),
        ("w_mk", (H, H)), ("b_mk", (1, H)),
        ("w_pv", (H, H)), ("b_pv", (1, H)),
        ("w_mv", (H, H)), ("b_mv", (1, H)),
        ("w_p1", (2 * H, H)), ("b_p1", (1, H)),
        ("w_p2", (H, H)), ("b_p2", (1, H)),
        ("w_m1", (2 * H, H)), ("b_m1", (1, H)),
        ("w_m2", (H, H)), ("b_m2", (1, H)),
    ]
    keys = jax.random.split(key, len(names_shapes))
    params = {}
    for (name, shape), k in zip(names_shapes, keys):
        fan_in = shape[0] if name.startswith("w") else H
        params[name] = (jax.random.normal(k, shape, jnp.float32) / math.sqrt(fan_in))
    return params
    # TODO(synk): clf head, dropout and *_rel glorot parameters are defined in the
    # PyTorch module but never used by forward(); they are intentionally omitted.


if __name__ == "__main__":
    key = jax.random.PRNGKey(0)
    k_data, k_params = jax.random.split(key)
    kd = jax.random.split(k_data, 4)
    S = 4  # step-batches per pallas_call (grid axis; weights stay VMEM-resident)
    prot_data = jax.random.normal(kd[0], (S, B, DP), jnp.float32)
    comp_data = jax.random.normal(kd[1], (S, B, DM), jnp.float32)
    train_prot_avg_emb = jax.random.normal(kd[2], (NP, H), jnp.float32)
    train_compound_avg_emb = jax.random.normal(kd[3], (NM, H), jnp.float32)
    params = make_params(k_params)

    # one-time packing: fused/stacked weights, bias slabs, precomputed K^T / V tables
    Wf32, Wbf16, BiasPack = pack_static(params, train_prot_avg_emb, train_compound_avg_emb)

    adj_pred = pair_model_forward(prot_data, comp_data, Wf32, Wbf16, BiasPack)
    adj_pred = jax.block_until_ready(adj_pred)                 # (S, B)

    ref = jnp.stack([
        reference_forward(prot_data[s], comp_data[s],
                          train_prot_avg_emb, train_compound_avg_emb, params)
        for s in range(S)], axis=0)
    ref = jax.block_until_ready(ref)

    assert adj_pred.shape == (S, B)
    assert bool(jnp.all(jnp.isfinite(adj_pred)))
    err = float(jnp.max(jnp.abs(adj_pred - ref)))
    assert err < 2e-2, f"max abs err {err}"
    print("KERNEL_OK")
</pallas_src>

<mosaic_0001>
module attributes {stable_mosaic.version = 11 : i64} {
  func.func @pair_model_kernel(%arg0: i32, %arg1: memref<1x8x32xf32, #tpu.memory_space<vmem>>, %arg2: memref<1x8x32xf32, #tpu.memory_space<vmem>>, %arg3: memref<448x128xf32, #tpu.memory_space<vmem>>, %arg4: memref<896x128xbf16, #tpu.memory_space<vmem>>, %arg5: memref<4x16x128xf32, #tpu.memory_space<vmem>>, %arg6: memref<1x8x128xf32, #tpu.memory_space<vmem>>) attributes {dimension_semantics = [#tpu.dimension_semantics<parallel>], iteration_bounds = array<i64: 4>, scalar_prefetch = 0 : i64, scratch_operands = 0 : i64, tpu.core_type = #tpu.core_type<tc>, window_params = [{transform_indices = @transform_0, window_bounds = array<i64: 1, 8, 32>}, {transform_indices = @transform_1, window_bounds = array<i64: 1, 8, 32>}, {pipeline_mode = #tpu.pipeline_mode<synchronous>, transform_indices = @transform_2, window_bounds = array<i64: 448, 128>}, {pipeline_mode = #tpu.pipeline_mode<synchronous>, transform_indices = @transform_3, window_bounds = array<i64: 896, 128>}, {pipeline_mode = #tpu.pipeline_mode<synchronous>, transform_indices = @transform_4, window_bounds = array<i64: 4, 16, 128>}, {transform_indices = @transform_5, window_bounds = array<i64: 1, 8, 128>}]} {
    %c0 = arith.constant 0 : index
    %c0_0 = arith.constant 0 : index
    %c0_1 = arith.constant 0 : index
    %0 = vector.load %arg1[%c0, %c0_0, %c0_1] : memref<1x8x32xf32, #tpu.memory_space<vmem>>, vector<1x8x32xf32>
    %1 = vector.shape_cast %0 : vector<1x8x32xf32> to vector<8x32xf32>
    %c0_2 = arith.constant 0 : index
    %c0_3 = arith.constant 0 : index
    %c0_4 = arith.constant 0 : index
    %2 = vector.load %arg2[%c0_2, %c0_3, %c0_4] : memref<1x8x32xf32, #tpu.memory_space<vmem>>, vector<1x8x32xf32>
    %3 = vector.shape_cast %2 : vector<1x8x32xf32> to vector<8x32xf32>
    %c0_5 = arith.constant 0 : index
    %c0_6 = arith.constant 0 : index
    %c0_7 = arith.constant 0 : index
    %4 = vector.load %arg5[%c0_5, %c0_6, %c0_7] : memref<4x16x128xf32, #tpu.memory_space<vmem>>, vector<4x16x128xf32>
    %5 = vector.extract_strided_slice %4 {offsets = [0, 0, 0], sizes = [1, 16, 128], strides = [1, 1, 1]} : vector<4x16x128xf32> to vector<1x16x128xf32>
    %6 = vector.shape_cast %5 : vector<1x16x128xf32> to vector<16x128xf32>
    %7 = vector.extract_strided_slice %4 {offsets = [1, 0, 0], sizes = [1, 16, 128], strides = [1, 1, 1]} : vector<4x16x128xf32> to vector<1x16x128xf32>
    %8 = vector.shape_cast %7 : vector<1x16x128xf32> to vector<16x128xf32>
    %9 = vector.extract_strided_slice %4 {offsets = [2, 0, 0], sizes = [1, 16, 128], strides = [1, 1, 1]} : vector<4x16x128xf32> to vector<1x16x128xf32>
    %10 = vector.shape_cast %9 : vector<1x16x128xf32> to vector<16x128xf32>
    %11 = vector.extract_strided_slice %4 {offsets = [3, 0, 0], sizes = [1, 16, 128], strides = [1, 1, 1]} : vector<4x16x128xf32> to vector<1x16x128xf32>
    %12 = vector.shape_cast %11 : vector<1x16x128xf32> to vector<16x128xf32>
    %c0_8 = arith.constant 0 : index
    %c0_9 = arith.constant 0 : index
    %13 = vector.load %arg3[%c0_8, %c0_9] : memref<448x128xf32, #tpu.memory_space<vmem>>, vector<32x128xf32>
    %cst = arith.constant dense<0.000000e+00> : vector<8x128xf32>
    %14 = tpu.matmul %1, %13, %cst {dimension_numbers = #tpu.dot_dimension_numbers<[1], [0], [0], [1], [0, 0, 1, 1], [], []>} : vector<8x32xf32>, vector<32x128xf32>, vector<8x128xf32> -> vector<8x128xf32>
    %15 = vector.extract_strided_slice %6 {offsets = [0, 0], sizes = [8, 128], strides = [1, 1]} : vector<16x128xf32> to vector<8x128xf32>
    %16 = arith.addf %14, %15 : vector<8x128xf32>
    %c32 = arith.constant 32 : index
    %c0_10 = arith.constant 0 : index
    %17 = vector.load %arg3[%c32, %c0_10] : memref<448x128xf32, #tpu.memory_space<vmem>>, vector<32x128xf32>
    %cst_11 = arith.constant dense<0.000000e+00> : vector<8x128xf32>
    %18 = tpu.matmul %3, %17, %cst_11 {dimension_numbers = #tpu.dot_dimension_numbers<[1], [0], [0], [1], [0, 0, 1, 1], [], []>} : vector<8x32xf32>, vector<32x128xf32>, vector<8x128xf32> -> vector<8x128xf32>
    %19 = vector.extract_strided_slice %6 {offsets = [8, 0], sizes = [8, 128], strides = [1, 1]} : vector<16x128xf32> to vector<8x128xf32>
    %20 = arith.addf %18, %19 : vector<8x128xf32>
    %cst_12 = arith.constant 0.000000e+00 : f32
    %21 = vector.broadcast %cst_12 : f32 to vector<8x128xf32>
    %22 = tpu.concatenate %16, %21 in 1 : vector<8x128xf32>, vector<8x128xf32> -> vector<8x256xf32>
    %23 = tpu.concatenate %21, %20 in 1 : vector<8x128xf32>, vector<8x128xf32> -> vector<8x256xf32>
    %24 = tpu.concatenate %22, %23 in 0 : vector<8x256xf32>, vector<8x256xf32> -> vector<16x256xf32>
    %c64 = arith.constant 64 : index
    %c0_13 = arith.constant 0 : index
    %25 = vector.load %arg3[%c64, %c0_13] : memref<448x128xf32, #tpu.memory_space<vmem>>, vector<256x128xf32>
    %cst_14 = arith.constant dense<0.000000e+00> : vector<16x128xf32>
    %26 = tpu.matmul %24, %25, %cst_14 {dimension_numbers = #tpu.dot_dimension_numbers<[1], [0], [0], [1], [0, 0, 1, 1], [], []>} : vector<16x256xf32>, vector<256x128xf32>, vector<16x128xf32> -> vector<16x128xf32>
    %27 = arith.addf %26, %8 : vector<16x128xf32>
    %c320 = arith.constant 320 : index
    %c0_15 = arith.constant 0 : index
    %28 = vector.load %arg3[%c320, %c0_15] : memref<448x128xf32, #tpu.memory_space<vmem>>, vector<128x128xf32>
    %cst_16 = arith.constant dense<0.000000e+00> : vector<16x128xf32>
    %29 = tpu.matmul %27, %28, %cst_16 {dimension_numbers = #tpu.dot_dimension_numbers<[1], [0], [0], [1], [0, 0, 1, 1], [], []>} : vector<16x128xf32>, vector<128x128xf32>, vector<16x128xf32> -> vector<16x128xf32>
    %30 = tpu.iota {dimensions = array<i32: 0>} : vector<16x128xi32>
    %31 = tpu.iota {dimensions = array<i32: 1>} : vector<16x128xi32>
    %c8_i32 = arith.constant 8 : i32
    %32 = vector.broadcast %c8_i32 : i32 to vector<16x128xi32>
    %33 = arith.cmpi slt, %30, %32 : vector<16x128xi32>
    %c64_i32 = arith.constant 64 : i32
    %34 = vector.broadcast %c64_i32 : i32 to vector<16x128xi32>
    %35 = arith.cmpi slt, %31, %34 : vector<16x128xi32>
    %36 = arith.xori %33, %35 : vector<16x128xi1>
    %cst_17 = arith.constant dense<true> : vector<16x128xi1>
    %37 = arith.xori %36, %cst_17 : vector<16x128xi1>
    %cst_18 = arith.constant -3.000000e+38 : f32
    %38 = vector.broadcast %cst_18 : f32 to vector<16x128xf32>
    %39 = arith.select %37, %29, %38 : vector<16x128xi1>, vector<16x128xf32>
    %40 = arith.sitofp %31 : vector<16x128xi32> to vector<16x128xf32>
    %cst_19 = arith.constant 9.99999997E-7 : f32
    %41 = vector.broadcast %cst_19 : f32 to vector<16x128xf32>
    %42 = arith.mulf %40, %41 : vector<16x128xf32>
    %43 = arith.subf %39, %42 : vector<16x128xf32>
    %false = arith.constant false
    %44 = vector.broadcast %false : i1 to vector<16x128xi1>
    %cst_20 = arith.constant dense<0xFF800000> : vector<16xf32>
    %45 = vector.multi_reduction <maximumf>, %43, %cst_20 [1] : vector<16x128xf32> to vector<16xf32>
    %46 = vector.shape_cast %45 : vector<16xf32> to vector<16x1xf32>
    %47 = vector.broadcast %46 : vector<16x1xf32> to vector<16x128xf32>
    %48 = arith.cmpf oeq, %43, %47 : vector<16x128xf32>
    %49 = arith.ori %44, %48 : vector<16x128xi1>
    %cst_21 = arith.constant -3.000000e+38 : f32
    %50 = vector.broadcast %cst_21 : f32 to vector<16x128xf32>
    %51 = arith.select %48, %50, %43 : vector<16x128xi1>, vector<16x128xf32>
    %cst_22 = arith.constant dense<0xFF800000> : vector<16xf32>
    %52 = vector.multi_reduction <maximumf>, %51, %cst_22 [1] : vector<16x128xf32> to vector<16xf32>
    %53 = vector.shape_cast %52 : vector<16xf32> to vector<16x1xf32>
    %54 = vector.broadcast %53 : vector<16x1xf32> to vector<16x128xf32>
    %55 = arith.cmpf oeq, %51, %54 : vector<16x128xf32>
    %56 = arith.ori %49, %55 : vector<16x128xi1>
    %cst_23 = arith.constant -3.000000e+38 : f32
    %57 = vector.broadcast %cst_23 : f32 to vector<16x128xf32>
    %58 = arith.select %55, %57, %51 : vector<16x128xi1>, vector<16x128xf32>
    %cst_24 = arith.constant dense<0xFF800000> : vector<16xf32>
    %59 = vector.multi_reduction <maximumf>, %58, %cst_24 [1] : vector<16x128xf32> to vector<16xf32>
    %60 = vector.shape_cast %59 : vector<16xf32> to vector<16x1xf32>
    %61 = vector.broadcast %60 : vector<16x1xf32> to vector<16x128xf32>
    %62 = arith.cmpf oeq, %58, %61 : vector<16x128xf32>
    %63 = arith.ori %56, %62 : vector<16x128xi1>
    %cst_25 = arith.constant -3.000000e+38 : f32
    %64 = vector.broadcast %cst_25 : f32 to vector<16x128xf32>
    %65 = arith.select %62, %64, %58 : vector<16x128xi1>, vector<16x128xf32>
    %cst_26 = arith.constant dense<0xFF800000> : vector<16xf32>
    %66 = vector.multi_reduction <maximumf>, %65, %cst_26 [1] : vector<16x128xf32> to vector<16xf32>
    %67 = vector.shape_cast %66 : vector<16xf32> to vector<16x1xf32>
    %68 = vector.broadcast %67 : vector<16x1xf32> to vector<16x128xf32>
    %69 = arith.cmpf oeq, %65, %68 : vector<16x128xf32>
    %70 = arith.ori %63, %69 : vector<16x128xi1>
    %cst_27 = arith.constant -3.000000e+38 : f32
    %71 = vector.broadcast %cst_27 : f32 to vector<16x128xf32>
    %72 = arith.select %69, %71, %65 : vector<16x128xi1>, vector<16x128xf32>
    %cst_28 = arith.constant dense<0xFF800000> : vector<16xf32>
    %73 = vector.multi_reduction <maximumf>, %72, %cst_28 [1] : vector<16x128xf32> to vector<16xf32>
    %74 = vector.shape_cast %73 : vector<16xf32> to vector<16x1xf32>
    %75 = vector.broadcast %74 : vector<16x1xf32> to vector<16x128xf32>
    %76 = arith.cmpf oeq, %72, %75 : vector<16x128xf32>
    %77 = arith.ori %70, %76 : vector<16x128xi1>
    %cst_29 = arith.constant -3.000000e+38 : f32
    %78 = vector.broadcast %cst_29 : f32 to vector<16x128xf32>
    %79 = arith.select %76, %78, %72 : vector<16x128xi1>, vector<16x128xf32>
    %cst_30 = arith.constant dense<0xFF800000> : vector<16xf32>
    %80 = vector.multi_reduction <maximumf>, %79, %cst_30 [1] : vector<16x128xf32> to vector<16xf32>
    %81 = vector.shape_cast %80 : vector<16xf32> to vector<16x1xf32>
    %82 = vector.broadcast %81 : vector<16x1xf32> to vector<16x128xf32>
    %83 = arith.cmpf oeq, %79, %82 : vector<16x128xf32>
    %84 = arith.ori %77, %83 : vector<16x128xi1>
    %cst_31 = arith.constant -3.000000e+38 : f32
    %85 = vector.broadcast %cst_31 : f32 to vector<16x128xf32>
    %86 = arith.select %83, %85, %79 : vector<16x128xi1>, vector<16x128xf32>
    %cst_32 = arith.constant dense<0xFF800000> : vector<16xf32>
    %87 = vector.multi_reduction <maximumf>, %86, %cst_32 [1] : vector<16x128xf32> to vector<16xf32>
    %88 = vector.shape_cast %87 : vector<16xf32> to vector<16x1xf32>
    %89 = vector.broadcast %88 : vector<16x1xf32> to vector<16x128xf32>
    %90 = arith.cmpf oeq, %86, %89 : vector<16x128xf32>
    %91 = arith.ori %84, %90 : vector<16x128xi1>
    %cst_33 = arith.constant -3.000000e+38 : f32
    %92 = vector.broadcast %cst_33 : f32 to vector<16x128xf32>
    %93 = arith.select %90, %92, %86 : vector<16x128xi1>, vector<16x128xf32>
    %cst_34 = arith.constant dense<0xFF800000> : vector<16xf32>
    %94 = vector.multi_reduction <maximumf>, %93, %cst_34 [1] : vector<16x128xf32> to vector<16xf32>
    %95 = vector.shape_cast %94 : vector<16xf32> to vector<16x1xf32>
    %96 = vector.broadcast %95 : vector<16x1xf32> to vector<16x128xf32>
    %97 = arith.cmpf oeq, %93, %96 : vector<16x128xf32>
    %98 = arith.ori %91, %97 : vector<16x128xi1>
    %cst_35 = arith.constant 0.0883883461 : f32
    %99 = vector.broadcast %cst_35 : f32 to vector<16x128xf32>
    %100 = arith.mulf %29, %99 : vector<16x128xf32>
    %cst_36 = arith.constant -3.000000e+38 : f32
    %101 = vector.broadcast %cst_36 : f32 to vector<16x128xf32>
    %102 = arith.select %98, %100, %101 : vector<16x128xi1>, vector<16x128xf32>
    %cst_37 = arith.constant dense<0xFF800000> : vector<16xf32>
    %103 = vector.multi_reduction <maximumf>, %102, %cst_37 [1] : vector<16x128xf32> to vector<16xf32>
    %104 = vector.shape_cast %103 : vector<16xf32> to vector<16x1xf32>
    %105 = vector.broadcast %104 : vector<16x1xf32> to vector<16x128xf32>
    %106 = arith.subf %102, %105 : vector<16x128xf32>
    %107 = math.exp %106 : vector<16x128xf32>
    %cst_38 = arith.constant 0.000000e+00 : f32
    %108 = vector.broadcast %cst_38 : f32 to vector<16x128xf32>
    %109 = arith.select %98, %107, %108 : vector<16x128xi1>, vector<16x128xf32>
    %cst_39 = arith.constant dense<0.000000e+00> : vector<16xf32>
    %110 = vector.multi_reduction <add>, %109, %cst_39 [1] : vector<16x128xf32> to vector<16xf32>
    %111 = vector.shape_cast %110 : vector<16xf32> to vector<16x1xf32>
    %112 = tpu.reciprocal %111 {approx = true} : vector<16x1xf32> -> vector<16x1xf32>
    %113 = vector.broadcast %112 : vector<16x1xf32> to vector<16x128xf32>
    %114 = arith.mulf %109, %113 : vector<16x128xf32>
    %115 = arith.truncf %114 : vector<16x128xf32> to vector<16x128xbf16>
    %c768 = arith.constant 768 : index
    %c0_40 = arith.constant 0 : index
    %116 = vector.load %arg4[%c768, %c0_40] : memref<896x128xbf16, #tpu.memory_space<vmem>>, vector<128x128xbf16>
    %cst_41 = arith.constant dense<0.000000e+00> : vector<16x128xf32>
    %117 = tpu.matmul %115, %116, %cst_41 {dimension_numbers = #tpu.dot_dimension_numbers<[1], [0], [0], [1], [0, 0, 1, 1], [], []>} : vector<16x128xbf16>, vector<128x128xbf16>, vector<16x128xf32> -> vector<16x128xf32>
    %118 = vector.extract_strided_slice %117 {offsets = [0, 0], sizes = [8, 128], strides = [1, 1]} : vector<16x128xf32> to vector<8x128xf32>
    %119 = vector.extract_strided_slice %117 {offsets = [8, 0], sizes = [8, 128], strides = [1, 1]} : vector<16x128xf32> to vector<8x128xf32>
    %120 = tpu.concatenate %16, %118, %21, %21 in 1 : vector<8x128xf32>, vector<8x128xf32>, vector<8x128xf32>, vector<8x128xf32> -> vector<8x512xf32>
    %121 = tpu.concatenate %21, %21, %20, %119 in 1 : vector<8x128xf32>, vector<8x128xf32>, vector<8x128xf32>, vector<8x128xf32> -> vector<8x512xf32>
    %122 = tpu.concatenate %120, %121 in 0 : vector<8x512xf32>, vector<8x512xf32> -> vector<16x512xf32>
    %123 = arith.truncf %122 : vector<16x512xf32> to vector<16x512xbf16>
    %c0_42 = arith.constant 0 : index
    %c0_43 = arith.constant 0 : index
    %124 = vector.load %arg4[%c0_42, %c0_43] : memref<896x128xbf16, #tpu.memory_space<vmem>>, vector<512x128xbf16>
    %cst_44 = arith.constant dense<0.000000e+00> : vector<16x128xf32>
    %125 = tpu.matmul %123, %124, %cst_44 {dimension_numbers = #tpu.dot_dimension_numbers<[1], [0], [0], [1], [0, 0, 1, 1], [], []>} : vector<16x512xbf16>, vector<512x128xbf16>, vector<16x128xf32> -> vector<16x128xf32>
    %126 = arith.addf %125, %10 : vector<16x128xf32>
    %cst_45 = arith.constant 0.000000e+00 : f32
    %127 = vector.broadcast %cst_45 : f32 to vector<16x128xf32>
    %128 = arith.maximumf %126, %127 : vector<16x128xf32>
    %129 = vector.extract_strided_slice %128 {offsets = [0, 0], sizes = [8, 128], strides = [1, 1]} : vector<16x128xf32> to vector<8x128xf32>
    %130 = tpu.concatenate %129, %21 in 1 : vector<8x128xf32>, vector<8x128xf32> -> vector<8x256xf32>
    %131 = vector.extract_strided_slice %128 {offsets = [8, 0], sizes = [8, 128], strides = [1, 1]} : vector<16x128xf32> to vector<8x128xf32>
    %132 = tpu.concatenate %21, %131 in 1 : vector<8x128xf32>, vector<8x128xf32> -> vector<8x256xf32>
    %133 = tpu.concatenate %130, %132 in 0 : vector<8x256xf32>, vector<8x256xf32> -> vector<16x256xf32>
    %134 = arith.truncf %133 : vector<16x256xf32> to vector<16x256xbf16>
    %c512 = arith.constant 512 : index
    %c0_46 = arith.constant 0 : index
    %135 = vector.load %arg4[%c512, %c0_46] : memref<896x128xbf16, #tpu.memory_space<vmem>>, vector<256x128xbf16>
    %cst_47 = arith.constant dense<0.000000e+00> : vector<16x128xf32>
    %136 = tpu.matmul %134, %135, %cst_47 {dimension_numbers = #tpu.dot_dimension_numbers<[1], [0], [0], [1], [0, 0, 1, 1], [], []>} : vector<16x256xbf16>, vector<256x128xbf16>, vector<16x128xf32> -> vector<16x128xf32>
    %137 = arith.addf %136, %12 : vector<16x128xf32>
    %138 = arith.mulf %137, %137 : vector<16x128xf32>
    %cst_48 = arith.constant dense<0.000000e+00> : vector<16xf32>
    %139 = vector.multi_reduction <add>, %138, %cst_48 [1] : vector<16x128xf32> to vector<16xf32>
    %140 = vector.shape_cast %139 : vector<16xf32> to vector<16x1xf32>
    %cst_49 = arith.constant 1.000000e-24 : f32
    %141 = vector.broadcast %cst_49 : f32 to vector<16x1xf32>
    %142 = arith.maximumf %140, %141 : vector<16x1xf32>
    %143 = math.rsqrt %142 : vector<16x1xf32>
    %144 = vector.broadcast %143 : vector<16x1xf32> to vector<16x128xf32>
    %145 = arith.mulf %137, %144 : vector<16x128xf32>
    %146 = vector.extract_strided_slice %145 {offsets = [0, 0], sizes = [8, 128], strides = [1, 1]} : vector<16x128xf32> to vector<8x128xf32>
    %147 = vector.extract_strided_slice %145 {offsets = [8, 0], sizes = [8, 128], strides = [1, 1]} : vector<16x128xf32> to vector<8x128xf32>
    %148 = arith.mulf %146, %147 : vector<8x128xf32>
    %cst_50 = arith.constant dense<0.000000e+00> : vector<8xf32>
    %149 = vector.multi_reduction <add>, %148, %cst_50 [1] : vector<8x128xf32> to vector<8xf32>
    %150 = vector.shape_cast %149 : vector<8xf32> to vector<8x1xf32>
    %cst_51 = arith.constant 1.000000e+00 : f32
    %151 = vector.broadcast %cst_51 : f32 to vector<8x1xf32>
    %152 = arith.addf %150, %151 : vector<8x1xf32>
    %cst_52 = arith.constant 5.000000e-01 : f32
    %153 = vector.broadcast %cst_52 : f32 to vector<8x1xf32>
    %154 = arith.mulf %152, %153 : vector<8x1xf32>
    %155 = vector.shape_cast %154 : vector<8x1xf32> to vector<8x1xf32>
    %156 = vector.broadcast %155 : vector<8x1xf32> to vector<8x128xf32>
    %c0_53 = arith.constant 0 : index
    %c0_54 = arith.constant 0 : index
    %c0_55 = arith.constant 0 : index
    %157 = vector.load %arg6[%c0_53, %c0_54, %c0_55] : memref<1x8x128xf32, #tpu.memory_space<vmem>>, vector<1x8x128xf32>
    %158 = vector.shape_cast %157 : vector<1x8x128xf32> to vector<8x128xf32>
    %159 = vector.shape_cast %156 : vector<8x128xf32> to vector<1x8x128xf32>
    tpu.vector_store %arg6[%c0_53, %c0_54, %c0_55], %159 {strides = array<i32>} : memref<1x8x128xf32, #tpu.memory_space<vmem>>, vector<1x8x128xf32>,
    return
  }
  func.func @transform_0(%arg0: i32) -> (i32, i32, i32) {
    %c0_i32 = arith.constant 0 : i32
    %c0_i32_0 = arith.constant 0 : i32
    %c0_i32_1 = arith.constant 0 : i32
    return %arg0, %c0_i32, %c0_i32_0 : i32, i32, i32
  }
  func.func @transform_1(%arg0: i32) -> (i32, i32, i32) {
    %c0_i32 = arith.constant 0 : i32
    %c0_i32_0 = arith.constant 0 : i32
    %c0_i32_1 = arith.constant 0 : i32
    return %arg0, %c0_i32, %c0_i32_0 : i32, i32, i32
  }
  func.func @transform_2(%arg0: i32) -> (i32, i32) {
    %c0_i32 = arith.constant 0 : i32
    %c0_i32_0 = arith.constant 0 : i32
    %c0_i32_1 = arith.constant 0 : i32
    return %c0_i32, %c0_i32_0 : i32, i32
  }
  func.func @transform_3(%arg0: i32) -> (i32, i32) {
    %c0_i32 = arith.constant 0 : i32
    %c0_i32_0 = arith.constant 0 : i32
    %c0_i32_1 = arith.constant 0 : i32
    return %c0_i32, %c0_i32_0 : i32, i32
  }
  func.func @transform_4(%arg0: i32) -> (i32, i32, i32) {
    %c0_i32 = arith.constant 0 : i32
    %c0_i32_0 = arith.constant 0 : i32
    %c0_i32_1 = arith.constant 0 : i32
    %c0_i32_2 = arith.constant 0 : i32
    return %c0_i32, %c0_i32_0, %c0_i32_1 : i32, i32, i32
  }
  func.func @transform_5(%arg0: i32) -> (i32, i32, i32) {
    %c0_i32 = arith.constant 0 : i32
    %c0_i32_0 = arith.constant 0 : i32
    %c0_i32_1 = arith.constant 0 : i32
    return %arg0, %c0_i32, %c0_i32_0 : i32, i32, i32
  }
}

</mosaic_0001>

<llo_original>
// kernel: tpu_custom_call.1
$region0: #{tpu_custom_call.1}
  #allocation0 [shape = 'u32[]', space=smem, size = 0x4, offset = 0x4, fixed_abs, tag = 'smem constant byte address 0x4 - core index']
  #allocation1 [shape = 'u32[144,128]{1,0:T(1,128)}', space=vmem, size = 0x12000, scoped, tag = 'internal scratch']
  %s0 = inlined_call_operand.hbm [shape: f32[4,8,32], index: 0, kind: input, shape index: {}]
  %s1 = inlined_call_operand.hbm [shape: f32[4,8,32], index: 1, kind: input, shape index: {}]
  %s2 = inlined_call_operand.hbm [shape: f32[448,128], index: 2, kind: input, shape index: {}]
  %s3 = inlined_call_operand.hbm [shape: bf16[896,128], index: 3, kind: input, shape index: {}]
  %s4 = inlined_call_operand.hbm [shape: f32[4,16,128], index: 4, kind: input, shape index: {}]
  %s5 = inlined_call_operand.hbm [shape: f32[4,8,128], index: 5, kind: output, shape index: {}]
  %s6 = sld [smem:[#allocation0]]
  $region73: #{tpu_custom_call.1} parent=0
    _
  %s8 = ssub.s32 1, %s6
  %s9 = scalar_select 0, %s8, %s6
  $region1: #{tpu_custom_call.1} parent=0
    #allocation2 [shape = 'u8[8192]{0}', space=vmem, size = 0x2000, scoped, tag = 'input window, operand 0']
    #allocation3 [shape = 's32[2]{0}', space=sflag, size = 0x8, scoped, tag = 'scoped memory for tpu_custom_call.1']
    #allocation4 [shape = 's32[2]{0}', space=sflag, size = 0x8, scoped, tag = 'scoped memory for tpu_custom_call.1']
    #allocation5 [shape = 'u8[8192]{0}', space=vmem, size = 0x2000, scoped, tag = 'input window, operand 1']
    #allocation6 [shape = 's32[2]{0}', space=sflag, size = 0x8, scoped, tag = 'scoped memory for tpu_custom_call.1']
    #allocation7 [shape = 'u8[229376]{0}', space=vmem, size = 0x38000, scoped, tag = 'input window, operand 2, single buffered']
    #allocation8 [shape = 'u8[229376]{0}', space=vmem, size = 0x38000, scoped, tag = 'input window, operand 3, single buffered']
    #allocation9 [shape = 's32[1]{0}', space=sflag, size = 0x4, scoped, tag = 'scoped memory for tpu_custom_call.1']
    #allocation10 [shape = 'u8[32768]{0}', space=vmem, size = 0x8000, scoped, tag = 'input window, operand 4, single buffered']
    #allocation11 [shape = 'u8[8192]{0}', space=vmem, size = 0x2000, scoped, tag = 'output window, operand 0']
    %10 = vsyncpa [#allocation3], 0
    %s11 = scalar_lea.sflag [#allocation3], 1
    %12 = vsyncpa %s11, 0
    %13 = vsyncpa [#allocation6], 0
    %s14 = scalar_lea.sflag [#allocation6], 1
    %15 = vsyncpa %s14, 0
    %16 = vsyncpa [#allocation9], 0
    %17 = vsyncpa [#allocation4], 0
    %s18 = scalar_lea.sflag [#allocation4], 1
    %19 = vsyncpa %s18, 0
    loop: start=0, step=1, limit=6
    $region2: #{tpu_custom_call.1} parent=1 // loop_pre_header
      _
    $region3: #{tpu_custom_call.1} parent=1 // loop_header
      %s21 = sphi 0, %s25
      %p22 = scmp.ge.s32.totalorder %s21, 6
      %s31 = sphi 0, %s33
      %s34 = sphi 0, %s31
      %s35 = sphi 0, %s34
      %s51 = sphi 0, %s35
      %s57 = sphi 0, %s59
      %s60 = sphi 0, %s57
      %s61 = sphi 0, %s60
      %s77 = sphi 0, %s61
      %s81 = sphi 0, %s81
      %s83 = sphi 0, %s81
      %s84 = sphi 0, %s83
      %s98 = sphi 0, %s84
      %s102 = sphi 0, %s102
      %s104 = sphi 0, %s102
      %s105 = sphi 0, %s104
      %s119 = sphi 0, %s105
      %s123 = sphi 0, %s123
      %s125 = sphi 0, %s123
      %s126 = sphi 0, %s125
      %s140 = sphi 0, %s126
      %s146 = sphi 0, %s148
      %s149 = sphi 0, %s146
      %s150 = sphi 0, %s149
      %s166 = sphi 0, %s150
    $region4: #{tpu_custom_call.1} parent=1 // loop_header_branch
      %24 = sbr.rel (%p22) target = $region8
    $region5: #{tpu_custom_call.1} parent=1 // loop_body
      %s26 = ssub.s32 %s21, 1
      %s27 = ssub.s32 %s21, 2
      %s28 = sadd.s32 %s21, 1
      %s29 = ssub.s32 %s21, %s28
      %p30 = scmp.eq.s32.totalorder %s29, 0
      %s32 = sadd.s32 %s31, 1
      %s33 = scalar_select %p30, %s31, %s32
      %p36 = pneg %p30
      %p37 = scmp.eq.s32.totalorder %s21, 3
      %p38 = por %p36, %p37
      %p39 = scmp.ne.s32.totalorder %s31, %s34
      %p40 = scmp.eq.s32.totalorder %s21, 0
      %p41 = por %p39, %p40
      %p42 = scmp.ne.s32.totalorder %s31, %s34
      %p43 = scmp.eq.s32.totalorder %s26, 3
      %p44 = por %p42, %p43
      %p45 = scmp.ne.s32.totalorder %s34, %s35
      %p46 = scmp.eq.s32.totalorder %s26, 0
      %p47 = por %p45, %p46
      %p48 = scmp.ne.s32.totalorder %s34, %s35
      %p49 = scmp.eq.s32.totalorder %s27, 3
      %p50 = por %p48, %p49
      %p52 = scmp.ne.s32.totalorder %s35, %s51
      %p53 = scmp.eq.s32.totalorder %s27, 0
      %p54 = por %p52, %p53
      %s55 = ssub.s32 %s21, %s28
      %p56 = scmp.eq.s32.totalorder %s55, 0
      %s58 = sadd.s32 %s57, 1
      %s59 = scalar_select %p56, %s57, %s58
      %p62 = pneg %p56
      %p63 = scmp.eq.s32.totalorder %s21, 3
      %p64 = por %p62, %p63
      %p65 = scmp.ne.s32.totalorder %s57, %s60
      %p66 = scmp.eq.s32.totalorder %s21, 0
      %p67 = por %p65, %p66
      %p68 = scmp.ne.s32.totalorder %s57, %s60
      %p69 = scmp.eq.s32.totalorder %s26, 3
      %p70 = por %p68, %p69
      %p71 = scmp.ne.s32.totalorder %s60, %s61
      %p72 = scmp.eq.s32.totalorder %s26, 0
      %p73 = por %p71, %p72
      %p74 = scmp.ne.s32.totalorder %s60, %s61
      %p75 = scmp.eq.s32.totalorder %s27, 3
      %p76 = por %p74, %p75
      %p78 = scmp.ne.s32.totalorder %s61, %s77
      %p79 = scmp.eq.s32.totalorder %s27, 0
      %p80 = por %p78, %p79
      %s82 = sadd.s32 %s81, 1
      %p85 = scmp.eq.s32.totalorder %s21, 3
      %p86 = scmp.ne.s32.totalorder %s81, %s83
      %p87 = scmp.eq.s32.totalorder %s21, 0
      %p88 = por %p86, %p87
      %p89 = scmp.ne.s32.totalorder %s81, %s83
      %p90 = scmp.eq.s32.totalorder %s26, 3
      %p91 = por %p89, %p90
      %p92 = scmp.ne.s32.totalorder %s83, %s84
      %p93 = scmp.eq.s32.totalorder %s26, 0
      %p94 = por %p92, %p93
      %p95 = scmp.ne.s32.totalorder %s83, %s84
      %p96 = scmp.eq.s32.totalorder %s27, 3
      %p97 = por %p95, %p96
      %p99 = scmp.ne.s32.totalorder %s84, %s98
      %p100 = scmp.eq.s32.totalorder %s27, 0
      %p101 = por %p99, %p100
      %s103 = sadd.s32 %s102, 1
      %p106 = scmp.eq.s32.totalorder %s21, 3
      %p107 = scmp.ne.s32.totalorder %s102, %s104
      %p108 = scmp.eq.s32.totalorder %s21, 0
      %p109 = por %p107, %p108
      %p110 = scmp.ne.s32.totalorder %s102, %s104
      %p111 = scmp.eq.s32.totalorder %s26, 3
      %p112 = por %p110, %p111
      %p113 = scmp.ne.s32.totalorder %s104, %s105
      %p114 = scmp.eq.s32.totalorder %s26, 0
      %p115 = por %p113, %p114
      %p116 = scmp.ne.s32.totalorder %s104, %s105
      %p117 = scmp.eq.s32.totalorder %s27, 3
      %p118 = por %p116, %p117
      %p120 = scmp.ne.s32.totalorder %s105, %s119
      %p121 = scmp.eq.s32.totalorder %s27, 0
      %p122 = por %p120, %p121
      %s124 = sadd.s32 %s123, 1
      %p127 = scmp.eq.s32.totalorder %s21, 3
      %p128 = scmp.ne.s32.totalorder %s123, %s125
      %p129 = scmp.eq.s32.totalorder %s21, 0
      %p130 = por %p128, %p129
      %p131 = scmp.ne.s32.totalorder %s123, %s125
      %p132 = scmp.eq.s32.totalorder %s26, 3
      %p133 = por %p131, %p132
      %p134 = scmp.ne.s32.totalorder %s125, %s126
      %p135 = scmp.eq.s32.totalorder %s26, 0
      %p136 = por %p134, %p135
      %p137 = scmp.ne.s32.totalorder %s125, %s126
      %p138 = scmp.eq.s32.totalorder %s27, 3
      %p139 = por %p137, %p138
      %p141 = scmp.ne.s32.totalorder %s126, %s140
      %p142 = scmp.eq.s32.totalorder %s27, 0
      %p143 = por %p141, %p142
      %s144 = ssub.s32 %s21, %s28
      %p145 = scmp.eq.s32.totalorder %s144, 0
      %s147 = sadd.s32 %s146, 1
      %s148 = scalar_select %p145, %s146, %s147
      %p151 = pneg %p145
      %p152 = scmp.eq.s32.totalorder %s21, 3
      %p153 = por %p151, %p152
      %p154 = scmp.ne.s32.totalorder %s146, %s149
      %p155 = scmp.eq.s32.totalorder %s21, 0
      %p156 = por %p154, %p155
      %p157 = scmp.ne.s32.totalorder %s146, %s149
      %p158 = scmp.eq.s32.totalorder %s26, 3
      %p159 = por %p157, %p158
      %p160 = scmp.ne.s32.totalorder %s149, %s150
      %p161 = scmp.eq.s32.totalorder %s26, 0
      %p162 = por %p160, %p161
      %p163 = scmp.ne.s32.totalorder %s149, %s150
      %p164 = scmp.eq.s32.totalorder %s27, 3
      %p165 = por %p163, %p164
      %p167 = scmp.ne.s32.totalorder %s150, %s166
      %p168 = scmp.eq.s32.totalorder %s27, 0
      %p169 = por %p167, %p168
      %p170 = scmp.le.s32.totalorder 1, %s21
      %p171 = scmp.lt.s32.totalorder %s21, 5
      %p172 = pnand %p170, %p171
      %p173 = pneg %p172
      // Predicated region
      $region9: #{tpu_custom_call.1} parent=5 // pred_check
        _
      $region10: #{tpu_custom_call.1} parent=5 // pred_check_branch
        %175 = sbr.rel (%p172) target = $region12
      $region11: #{tpu_custom_call.1} parent=5 // pred_region
        %s176 = ssub.s32 %s21, 1
        // Predicated region
        $region13: #{tpu_custom_call.1} parent=11 // pred_check
          %p177 = pneg %p94
        $region14: #{tpu_custom_call.1} parent=11 // pred_check_branch
          %179 = sbr.rel (%p177) target = $region16
        $region15: #{tpu_custom_call.1} parent=11 // pred_region
          %s181 = ssub.s32 7168, 7168
          %182 = vsyncadd [#allocation6], %s181
          %s183 = sshll.u32 [#allocation7], 4
          %s184 = int_to_ptr.vmem [resolvable:$true] %s183
          %189 = dma.hbm_to_vmem [thread:$0]  %s2, 7168, %s184, [#allocation6], 128, 128, 8
        $region16: #{tpu_custom_call.1} parent=11 // pred_fallthru
          _
        // Predicated region
        $region17: #{tpu_custom_call.1} parent=11 // pred_check
          %p190 = pneg %p115
        $region18: #{tpu_custom_call.1} parent=11 // pred_check_branch
          %192 = sbr.rel (%p190) target = $region20
        $region19: #{tpu_custom_call.1} parent=11 // pred_region
          %s194 = ssub.s32 7168, 7168
          %195 = vsyncadd [#allocation9], %s194
          %s196 = sshll.u32 [#allocation8], 4
          %s197 = int_to_ptr.vmem [resolvable:$true] %s196
          %202 = dma.hbm_to_vmem [thread:$0]  %s3, 7168, %s197, [#allocation9], 64, 64, 4
        $region20: #{tpu_custom_call.1} parent=11 // pred_fallthru
          _
        // Predicated region
        $region21: #{tpu_custom_call.1} parent=11 // pred_check
          %p203 = pneg %p136
        $region22: #{tpu_custom_call.1} parent=11 // pred_check_branch
          %205 = sbr.rel (%p203) target = $region24
        $region23: #{tpu_custom_call.1} parent=11 // pred_region
          %s207 = ssub.s32 1024, 1024
          %208 = vsyncadd [#allocation9], %s207
          %s209 = sshll.u32 [#allocation10], 4
          %s210 = int_to_ptr.vmem [resolvable:$true] %s209
          %215 = dma.hbm_to_vmem [thread:$0]  %s4, 1024, %s210, [#allocation9], 128, 128, 8
        $region24: #{tpu_custom_call.1} parent=11 // pred_fallthru
          _
      $region12: #{tpu_custom_call.1} parent=5 // pred_fallthru
        _
      %p216 = scmp.lt.s32.totalorder %s21, 4
      // Predicated region
      $region25: #{tpu_custom_call.1} parent=5 // pred_check
        %p217 = pneg %p216
      $region26: #{tpu_custom_call.1} parent=5 // pred_check_branch
        %219 = sbr.rel (%p217) target = $region28
      $region27: #{tpu_custom_call.1} parent=5 // pred_region
        // Predicated region
        $region29: #{tpu_custom_call.1} parent=27 // pred_check
          %p220 = pneg %p41
        $region30: #{tpu_custom_call.1} parent=27 // pred_check_branch
          %222 = sbr.rel (%p220) target = $region32
        $region31: #{tpu_custom_call.1} parent=27 // pred_region
          %s223 = sand.u32 %s31, 1
          %s224 = scalar_lea.sflag [#allocation3], %s223
          %s225 = sand.u32 %s31, 1
          %s226 = smul.addr %s225, 8
          %s227 = scalar_lea.vmem [#allocation2], %s226
          %s229 = ssub.s32 128, 128
          %230 = vsyncadd %s224, %s229
          %s231 = smul.addr %s21, 128
          %s232 = scalar_lea.hbm %s0, %s231
          %s234 = sshll.u32 %s227, 4
          %s235 = int_to_ptr.vmem [resolvable:$true] %s234
          %237 = dma.hbm_to_vmem [thread:$0]  %s232, 128, %s235, %s224
        $region32: #{tpu_custom_call.1} parent=27 // pred_fallthru
          _
        // Predicated region
        $region33: #{tpu_custom_call.1} parent=27 // pred_check
          %p238 = pneg %p67
        $region34: #{tpu_custom_call.1} parent=27 // pred_check_branch
          %240 = sbr.rel (%p238) target = $region36
        $region35: #{tpu_custom_call.1} parent=27 // pred_region
          %s241 = sand.u32 %s21, 1
          %s242 = scalar_lea.sflag [#allocation6], %s241
          %s243 = sand.u32 %s57, 1
          %s244 = smul.addr %s243, 8
          %s245 = scalar_lea.vmem [#allocation5], %s244
          %s247 = ssub.s32 128, 128
          %248 = vsyncadd %s242, %s247
          %s249 = smul.addr %s21, 128
          %s250 = scalar_lea.hbm %s1, %s249
          %s252 = sshll.u32 %s245, 4
          %s253 = int_to_ptr.vmem [resolvable:$true] %s252
          %255 = dma.hbm_to_vmem [thread:$0]  %s250, 128, %s253, %s242
        $region36: #{tpu_custom_call.1} parent=27 // pred_fallthru
          _
      $region28: #{tpu_custom_call.1} parent=5 // pred_fallthru
        _
      %p256 = scmp.le.s32.totalorder 1, %s21
      %p257 = scmp.lt.s32.totalorder %s21, 5
      %p258 = pnand %p256, %p257
      %p259 = pneg %p258
      // Predicated region
      $region37: #{tpu_custom_call.1} parent=5 // pred_check
        _
      $region38: #{tpu_custom_call.1} parent=5 // pred_check_branch
        %261 = sbr.rel (%p258) target = $region40
      $region39: #{tpu_custom_call.1} parent=5 // pred_region
        %s262 = ssub.s32 %s21, 1
        %s263 = sand.u32 %s34, 1
        %s264 = scalar_lea.sflag [#allocation3], %s263
        %s265 = sand.u32 %s34, 1
        %s266 = smul.addr %s265, 8
        %s267 = scalar_lea.vmem [#allocation2], %s266
        // Predicated region
        $region41: #{tpu_custom_call.1} parent=39 // pred_check
          %p268 = pneg %p47
        $region42: #{tpu_custom_call.1} parent=39 // pred_check_branch
          %270 = sbr.rel (%p268) target = $region44
        $region43: #{tpu_custom_call.1} parent=39 // pred_region
          %271 = dma.done %s264, 128
        $region44: #{tpu_custom_call.1} parent=39 // pred_fallthru
          _
        %s272 = sand.u32 %s26, 1
        %s273 = scalar_lea.sflag [#allocation6], %s272
        %s274 = sand.u32 %s60, 1
        %s275 = smul.addr %s274, 8
        %s276 = scalar_lea.vmem [#allocation5], %s275
        // Predicated region
        $region45: #{tpu_custom_call.1} parent=39 // pred_check
          %p277 = pneg %p73
        $region46: #{tpu_custom_call.1} parent=39 // pred_check_branch
          %279 = sbr.rel (%p277) target = $region48
        $region47: #{tpu_custom_call.1} parent=39 // pred_region
          %280 = dma.done %s273, 128
        $region48: #{tpu_custom_call.1} parent=39 // pred_fallthru
          _
        // Predicated region
        $region49: #{tpu_custom_call.1} parent=39 // pred_check
          %p281 = pneg %p94
        $region50: #{tpu_custom_call.1} parent=39 // pred_check_branch
          %283 = sbr.rel (%p281) target = $region52
        $region51: #{tpu_custom_call.1} parent=39 // pred_region
          %284 = dma.done [#allocation6], 7168
        $region52: #{tpu_custom_call.1} parent=39 // pred_fallthru
          _
        // Predicated region
        $region53: #{tpu_custom_call.1} parent=39 // pred_check
          %p285 = pneg %p115
        $region54: #{tpu_custom_call.1} parent=39 // pred_check_branch
          %287 = sbr.rel (%p285) target = $region56
        $region55: #{tpu_custom_call.1} parent=39 // pred_region
          %288 = dma.done [#allocation9], 7168
        $region56: #{tpu_custom_call.1} parent=39 // pred_fallthru
          _
        // Predicated region
        $region57: #{tpu_custom_call.1} parent=39 // pred_check
          %p289 = pneg %p136
        $region58: #{tpu_custom_call.1} parent=39 // pred_check_branch
          %291 = sbr.rel (%p289) target = $region60
        $region59: #{tpu_custom_call.1} parent=39 // pred_region
          %292 = dma.done [#allocation9], 1024
        $region60: #{tpu_custom_call.1} parent=39 // pred_fallthru
          _
        %s293 = sand.u32 %s34, 1
        %s294 = scalar_lea.sflag [#allocation3], %s293
        %s295 = sand.u32 %s34, 1
        %s296 = smul.addr %s295, 8
        %s297 = scalar_lea.vmem [#allocation2], %s296
        %p298 = pneg %p47
        %p299 = pneg %p44
        %s300 = sand.u32 %s26, 1
        %s301 = scalar_lea.sflag [#allocation6], %s300
        %s302 = sand.u32 %s60, 1
        %s303 = smul.addr %s302, 8
        %s304 = scalar_lea.vmem [#allocation5], %s303
        %p305 = pneg %p73
        %p306 = pneg %p70
        %p307 = pneg %p94
        %p308 = pneg %p91
        %p309 = pneg %p115
        %p310 = pneg %p112
        %p311 = pneg %p136
        %p312 = pneg %p133
        %p313 = pneg %p162
        %p314 = pneg %p159
        %s315 = sand.u32 %s149, 1
        %s316 = scalar_lea.sflag [#allocation4], %s315
        %s317 = sand.u32 %s149, 1
        %s318 = smul.addr %s317, 8
        %s319 = scalar_lea.vmem [#allocation11], %s318
        %v321 = vld [vmem:[%s267] sm:$0xff]
        %v322 = vld [vmem:[%s276] sm:$0xff]
        %v323 = vld [vmem:[#allocation10] sm:$0xff]
        %v324 = vld [vmem:[#allocation10 + $0x8] sm:$0xff]
        %v325 = vld [vmem:[#allocation10 + $0x10] sm:$0xff]
        %v326 = vld [vmem:[#allocation10 + $0x18] sm:$0xff]
        %v327 = vld [vmem:[#allocation10 + $0x20] sm:$0xff]
        %v328 = vld [vmem:[#allocation10 + $0x28] sm:$0xff]
        %v329 = vld [vmem:[#allocation10 + $0x30] sm:$0xff]
        %v330 = vld [vmem:[#allocation10 + $0x38] sm:$0xff]
        %v331 = vld [vmem:[#allocation7] sm:$0xff]
        %v332 = vld [vmem:[#allocation7 + $0x8] sm:$0xff]
        %v333 = vld [vmem:[#allocation7 + $0x10] sm:$0xff]
        %v334 = vld [vmem:[#allocation7 + $0x18] sm:$0xff]
        %vm335 = vcmask 261120
        %v337 = vsel %vm335, %v321, 0
        %339 = vmatprep.subr.mxu0 0.0
        %340 = vmatpush1.msra.mxu0 %v331
        %341 = vmatprep.subr.mxu0 0.0
        %342 = vmatpush1.msra.mxu0 %v332
        %343 = vmatprep.subr.mxu0 0.0
        %344 = vmatpush1.msra.mxu0 %v333
        %345 = vmatprep.subr.mxu0 0.0
        %346 = vmatpush1.msra.mxu0 %v334
        %347 = vmatprep.subr.mxu0 0.0
        %348 = vmatpush1.msra.mxu0 0.0
        %349 = vmatprep.subr.mxu0 0.0
        %350 = vmatpush1.msra.mxu0 0.0
        %351 = vmatprep.subr.mxu0 0.0
        %352 = vmatpush1.msra.mxu0 0.0
        %353 = vmatprep.subr.mxu0 0.0
        %354 = vmatpush1.msra.mxu0 0.0
        %355 = vmatprep.subr.mxu0 0.0
        %356 = vmatpush1.msra.mxu0 0.0
        %357 = vmatprep.subr.mxu0 0.0
        %358 = vmatpush1.msra.mxu0 0.0
        %359 = vmatprep.subr.mxu0 0.0
        %360 = vmatpush1.msra.mxu0 0.0
        %361 = vmatprep.subr.mxu0 0.0
        %362 = vmatpush1.msra.mxu0 0.0
        %363 = vmatprep.subr.mxu0 0.0
        %364 = vmatpush1.msra.mxu0 0.0
        %365 = vmatprep.subr.mxu0 0.0
        %366 = vmatpush1.msra.mxu0 0.0
        %367 = vmatprep.subr.mxu0 0.0
        %368 = vmatpush1.msra.mxu0 0.0
        %369 = vmatprep.subr.mxu0 0.0
        %370 = vmatpush1.msra.mxu0 0.0
        %371 = vmatprep.subr.mxu0 0.0
        %372 = vmatpush1.msra.mxu0 0.0
        %373 = vmatprep.subr.mxu0 0.0
        %374 = vmatpush1.msra.mxu0 0.0
        %375 = vmatprep.subr.mxu0 0.0
        %376 = vmatpush1.msra.mxu0 0.0
        %377 = vmatprep.subr.mxu0 0.0
        %378 = vmatpush1.msra.mxu0 0.0
        %379 = vmatprep.subr.mxu0 0.0
        %380 = vmatpush1.msra.mxu0 0.0
        %381 = vmatprep.subr.mxu0 0.0
        %382 = vmatpush1.msra.mxu0 0.0
        %383 = vmatprep.subr.mxu0 0.0
        %384 = vmatpush1.msra.mxu0 0.0
        %385 = vmatprep.subr.mxu0 0.0
        %386 = vmatpush1.msra.mxu0 0.0
        %387 = vmatprep.subr.mxu0 0.0
        %388 = vmatpush1.msra.mxu0 0.0
        %389 = vmatprep.subr.mxu0 0.0
        %390 = vmatpush1.msra.mxu0 0.0
        %391 = vmatprep.subr.mxu0 0.0
        %392 = vmatpush1.msra.mxu0 0.0
        %393 = vmatprep.subr.mxu0 0.0
        %394 = vmatpush1.msra.mxu0 0.0
        %395 = vmatprep.subr.mxu0 0.0
        %396 = vmatpush1.msra.mxu0 0.0
        %397 = vmatprep.subr.mxu0 0.0
        %398 = vmatpush1.msra.mxu0 0.0
        %399 = vmatprep.subr.mxu0 0.0
        %400 = vmatpush1.msra.mxu0 0.0
        %401 = vmatprep.subr.mxu0 0.0
        %402 = vmatpush1.msra.mxu0 0.0
        %403 = vmatprep.mubr.f32.mxu0 0.0
        %404 = vmatmul.mubr.f32.gmra.mrb[0].mxu0 %v337
        %v405 = vpop.f32.mrb[0].mxu0
        %v406 = vadd.f32 %v323, %v405
        %v407 = vpop.f32.mrb[0].mxu0
        %408 = vdwg.mxu0
        %v409 = vld [vmem:[#allocation7 + $0x20] sm:$0xff]
        %v410 = vld [vmem:[#allocation7 + $0x28] sm:$0xff]
        %v411 = vld [vmem:[#allocation7 + $0x30] sm:$0xff]
        %v412 = vld [vmem:[#allocation7 + $0x38] sm:$0xff]
        %v414 = vsel %vm335, %v322, 0
        %416 = vmatprep.subr.mxu0 0.0
        %417 = vmatpush1.msra.mxu0 %v409
        %418 = vmatprep.subr.mxu0 0.0
        %419 = vmatpush1.msra.mxu0 %v410
        %420 = vmatprep.subr.mxu0 0.0
        %421 = vmatpush1.msra.mxu0 %v411
        %422 = vmatprep.subr.mxu0 0.0
        %423 = vmatpush1.msra.mxu0 %v412
        %424 = vmatprep.subr.mxu0 0.0
        %425 = vmatpush1.msra.mxu0 0.0
        %426 = vmatprep.subr.mxu0 0.0
        %427 = vmatpush1.msra.mxu0 0.0
        %428 = vmatprep.subr.mxu0 0.0
        %429 = vmatpush1.msra.mxu0 0.0
        %430 = vmatprep.subr.mxu0 0.0
        %431 = vmatpush1.msra.mxu0 0.0
        %432 = vmatprep.subr.mxu0 0.0
        %433 = vmatpush1.msra.mxu0 0.0
        %434 = vmatprep.subr.mxu0 0.0
        %435 = vmatpush1.msra.mxu0 0.0
        %436 = vmatprep.subr.mxu0 0.0
        %437 = vmatpush1.msra.mxu0 0.0
        %438 = vmatprep.subr.mxu0 0.0
        %439 = vmatpush1.msra.mxu0 0.0
        %440 = vmatprep.subr.mxu0 0.0
        %441 = vmatpush1.msra.mxu0 0.0
        %442 = vmatprep.subr.mxu0 0.0
        %443 = vmatpush1.msra.mxu0 0.0
        %444 = vmatprep.subr.mxu0 0.0
        %445 = vmatpush1.msra.mxu0 0.0
        %446 = vmatprep.subr.mxu0 0.0
        %447 = vmatpush1.msra.mxu0 0.0
        %448 = vmatprep.subr.mxu0 0.0
        %449 = vmatpush1.msra.mxu0 0.0
        %450 = vmatprep.subr.mxu0 0.0
        %451 = vmatpush1.msra.mxu0 0.0
        %452 = vmatprep.subr.mxu0 0.0
        %453 = vmatpush1.msra.mxu0 0.0
        %454 = vmatprep.subr.mxu0 0.0
        %455 = vmatpush1.msra.mxu0 0.0
        %456 = vmatprep.subr.mxu0 0.0
        %457 = vmatpush1.msra.mxu0 0.0
        %458 = vmatprep.subr.mxu0 0.0
        %459 = vmatpush1.msra.mxu0 0.0
        %460 = vmatprep.subr.mxu0 0.0
        %461 = vmatpush1.msra.mxu0 0.0
        %462 = vmatprep.subr.mxu0 0.0
        %463 = vmatpush1.msra.mxu0 0.0
        %464 = vmatprep.subr.mxu0 0.0
        %465 = vmatpush1.msra.mxu0 0.0
        %466 = vmatprep.subr.mxu0 0.0
        %467 = vmatpush1.msra.mxu0 0.0
        %468 = vmatprep.subr.mxu0 0.0
        %469 = vmatpush1.msra.mxu0 0.0
        %470 = vmatprep.subr.mxu0 0.0
        %471 = vmatpush1.msra.mxu0 0.0
        %472 = vmatprep.subr.mxu0 0.0
        %473 = vmatpush1.msra.mxu0 0.0
        %474 = vmatprep.subr.mxu0 0.0
        %475 = vmatpush1.msra.mxu0 0.0
        %476 = vmatprep.subr.mxu0 0.0
        %477 = vmatpush1.msra.mxu0 0.0
        %478 = vmatprep.subr.mxu0 0.0
        %479 = vmatpush1.msra.mxu0 0.0
        %480 = vmatprep.mubr.f32.mxu0 0.0
        %481 = vmatmul.mubr.f32.gmra.mrb[0].mxu0 %v414
        %v482 = vpop.f32.mrb[0].mxu0
        %v483 = vadd.f32 %v324, %v482
        %v484 = vpop.f32.mrb[0].mxu0
        %485 = vdwg.mxu0
        %v486 = vld [vmem:[#allocation7 + $0x40] sm:$0xff]
        %v487 = vld [vmem:[#allocation7 + $0x48] sm:$0xff]
        %v488 = vld [vmem:[#allocation7 + $0x50] sm:$0xff]
        %v489 = vld [vmem:[#allocation7 + $0x58] sm:$0xff]
        %v490 = vld [vmem:[#allocation7 + $0x60] sm:$0xff]
        %v491 = vld [vmem:[#allocation7 + $0x68] sm:$0xff]
        %v492 = vld [vmem:[#allocation7 + $0x70] sm:$0xff]
        %v493 = vld [vmem:[#allocation7 + $0x78] sm:$0xff]
        %v494 = vld [vmem:[#allocation7 + $0x80] sm:$0xff]
        %v495 = vld [vmem:[#allocation7 + $0x88] sm:$0xff]
        %v496 = vld [vmem:[#allocation7 + $0x90] sm:$0xff]
        %v497 = vld [vmem:[#allocation7 + $0x98] sm:$0xff]
        %v498 = vld [vmem:[#allocation7 + $0xa0] sm:$0xff]
        %v499 = vld [vmem:[#allocation7 + $0xa8] sm:$0xff]
        %v500 = vld [vmem:[#allocation7 + $0xb0] sm:$0xff]
        %v501 = vld [vmem:[#allocation7 + $0xb8] sm:$0xff]
        %v502 = vld [vmem:[#allocation7 + $0xc0] sm:$0xff]
        %v503 = vld [vmem:[#allocation7 + $0xc8] sm:$0xff]
        %v504 = vld [vmem:[#allocation7 + $0xd0] sm:$0xff]
        %v505 = vld [vmem:[#allocation7 + $0xd8] sm:$0xff]
        %v506 = vld [vmem:[#allocation7 + $0xe0] sm:$0xff]
        %v507 = vld [vmem:[#allocation7 + $0xe8] sm:$0xff]
        %v508 = vld [vmem:[#allocation7 + $0xf0] sm:$0xff]
        %v509 = vld [vmem:[#allocation7 + $0xf8] sm:$0xff]
        %v510 = vld [vmem:[#allocation7 + $0x100] sm:$0xff]
        %v511 = vld [vmem:[#allocation7 + $0x108] sm:$0xff]
        %v512 = vld [vmem:[#allocation7 + $0x110] sm:$0xff]
        %v513 = vld [vmem:[#allocation7 + $0x118] sm:$0xff]
        %v514 = vld [vmem:[#allocation7 + $0x120] sm:$0xff]
        %v515 = vld [vmem:[#allocation7 + $0x128] sm:$0xff]
        %v516 = vld [vmem:[#allocation7 + $0x130] sm:$0xff]
        %v517 = vld [vmem:[#allocation7 + $0x138] sm:$0xff]
        %518 = vmatprep.subr.mxu0 0.0
        %519 = vmatpush1.msra.mxu0 %v486
        %520 = vmatprep.subr.mxu0 0.0
        %521 = vmatpush1.msra.mxu0 %v487
        %522 = vmatprep.subr.mxu0 0.0
        %523 = vmatpush1.msra.mxu0 %v488
        %524 = vmatprep.subr.mxu0 0.0
        %525 = vmatpush1.msra.mxu0 %v489
        %526 = vmatprep.subr.mxu0 0.0
        %527 = vmatpush1.msra.mxu0 %v490
        %528 = vmatprep.subr.mxu0 0.0
        %529 = vmatpush1.msra.mxu0 %v491
        %530 = vmatprep.subr.mxu0 0.0
        %531 = vmatpush1.msra.mxu0 %v492
        %532 = vmatprep.subr.mxu0 0.0
        %533 = vmatpush1.msra.mxu0 %v493
        %534 = vmatprep.subr.mxu0 0.0
        %535 = vmatpush1.msra.mxu0 %v494
        %536 = vmatprep.subr.mxu0 0.0
        %537 = vmatpush1.msra.mxu0 %v495
        %538 = vmatprep.subr.mxu0 0.0
        %539 = vmatpush1.msra.mxu0 %v496
        %540 = vmatprep.subr.mxu0 0.0
        %541 = vmatpush1.msra.mxu0 %v497
        %542 = vmatprep.subr.mxu0 0.0
        %543 = vmatpush1.msra.mxu0 %v498
        %544 = vmatprep.subr.mxu0 0.0
        %545 = vmatpush1.msra.mxu0 %v499
        %546 = vmatprep.subr.mxu0 0.0
        %547 = vmatpush1.msra.mxu0 %v500
        %548 = vmatprep.subr.mxu0 0.0
        %549 = vmatpush1.msra.mxu0 %v501
        %550 = vmatprep.subr.mxu0 0.0
        %551 = vmatpush1.msra.mxu0 %v502
        %552 = vmatprep.subr.mxu0 0.0
        %553 = vmatpush1.msra.mxu0 %v503
        %554 = vmatprep.subr.mxu0 0.0
        %555 = vmatpush1.msra.mxu0 %v504
        %556 = vmatprep.subr.mxu0 0.0
        %557 = vmatpush1.msra.mxu0 %v505
        %558 = vmatprep.subr.mxu0 0.0
        %559 = vmatpush1.msra.mxu0 %v506
        %560 = vmatprep.subr.mxu0 0.0
        %561 = vmatpush1.msra.mxu0 %v507
        %562 = vmatprep.subr.mxu0 0.0
        %563 = vmatpush1.msra.mxu0 %v508
        %564 = vmatprep.subr.mxu0 0.0
        %565 = vmatpush1.msra.mxu0 %v509
        %566 = vmatprep.subr.mxu0 0.0
        %567 = vmatpush1.msra.mxu0 %v510
        %568 = vmatprep.subr.mxu0 0.0
        %569 = vmatpush1.msra.mxu0 %v511
        %570 = vmatprep.subr.mxu0 0.0
        %571 = vmatpush1.msra.mxu0 %v512
        %572 = vmatprep.subr.mxu0 0.0
        %573 = vmatpush1.msra.mxu0 %v513
        %574 = vmatprep.subr.mxu0 0.0
        %575 = vmatpush1.msra.mxu0 %v514
        %576 = vmatprep.subr.mxu0 0.0
        %577 = vmatpush1.msra.mxu0 %v515
        %578 = vmatprep.subr.mxu0 0.0
        %579 = vmatpush1.msra.mxu0 %v516
        %580 = vmatprep.subr.mxu0 0.0
        %581 = vmatpush1.msra.mxu0 %v517
        %582 = vmatprep.mubr.f32.mxu0 0.0
        %583 = vmatmul.mubr.f32.gmra.mrb[0].mxu0 %v406
        %v584 = vpop.f32.mrb[0].mxu0
        %v585 = vadd.f32 %v325, %v584
        %v586 = vpop.f32.mrb[0].mxu0
        %587 = vmatprep.mubr.f32.mxu0 %v483
        %588 = vmatmul.mubr.f32.gmra.mrb[0].mxu0 0.0
        %v589 = vpop.f32.mrb[0].mxu0
        %v590 = vadd.f32 %v326, %v589
        %v591 = vpop.f32.mrb[0].mxu0
        %592 = vdwg.mxu0
        %v593 = vld [vmem:[#allocation7 + $0x140] sm:$0xff]
        %v594 = vld [vmem:[#allocation7 + $0x148] sm:$0xff]
        %v595 = vld [vmem:[#allocation7 + $0x150] sm:$0xff]
        %v596 = vld [vmem:[#allocation7 + $0x158] sm:$0xff]
        %v597 = vld [vmem:[#allocation7 + $0x160] sm:$0xff]
        %v598 = vld [vmem:[#allocation7 + $0x168] sm:$0xff]
        %v599 = vld [vmem:[#allocation7 + $0x170] sm:$0xff]
        %v600 = vld [vmem:[#allocation7 + $0x178] sm:$0xff]
        %v601 = vld [vmem:[#allocation7 + $0x180] sm:$0xff]
        %v602 = vld [vmem:[#allocation7 + $0x188] sm:$0xff]
        %v603 = vld [vmem:[#allocation7 + $0x190] sm:$0xff]
        %v604 = vld [vmem:[#allocation7 + $0x198] sm:$0xff]
        %v605 = vld [vmem:[#allocation7 + $0x1a0] sm:$0xff]
        %v606 = vld [vmem:[#allocation7 + $0x1a8] sm:$0xff]
        %v607 = vld [vmem:[#allocation7 + $0x1b0] sm:$0xff]
        %v608 = vld [vmem:[#allocation7 + $0x1b8] sm:$0xff]
        %609 = vmatprep.subr.mxu0 0.0
        %610 = vmatpush1.msra.mxu0 %v593
        %611 = vmatprep.subr.mxu0 0.0
        %612 = vmatpush1.msra.mxu0 %v594
        %613 = vmatprep.subr.mxu0 0.0
        %614 = vmatpush1.msra.mxu0 %v595
        %615 = vmatprep.subr.mxu0 0.0
        %616 = vmatpush1.msra.mxu0 %v596
        %617 = vmatprep.subr.mxu0 0.0
        %618 = vmatpush1.msra.mxu0 %v597
        %619 = vmatprep.subr.mxu0 0.0
        %620 = vmatpush1.msra.mxu0 %v598
        %621 = vmatprep.subr.mxu0 0.0
        %622 = vmatpush1.msra.mxu0 %v599
        %623 = vmatprep.subr.mxu0 0.0
        %624 = vmatpush1.msra.mxu0 %v600
        %625 = vmatprep.subr.mxu0 0.0
        %626 = vmatpush1.msra.mxu0 %v601
        %627 = vmatprep.subr.mxu0 0.0
        %628 = vmatpush1.msra.mxu0 %v602
        %629 = vmatprep.subr.mxu0 0.0
        %630 = vmatpush1.msra.mxu0 %v603
        %631 = vmatprep.subr.mxu0 0.0
        %632 = vmatpush1.msra.mxu0 %v604
        %633 = vmatprep.subr.mxu0 0.0
        %634 = vmatpush1.msra.mxu0 %v605
        %635 = vmatprep.subr.mxu0 0.0
        %636 = vmatpush1.msra.mxu0 %v606
        %637 = vmatprep.subr.mxu0 0.0
        %638 = vmatpush1.msra.mxu0 %v607
        %639 = vmatprep.subr.mxu0 0.0
        %640 = vmatpush1.msra.mxu0 %v608
        %641 = vmatprep.subr.mxu0 0.0
        %642 = vmatpush1.msra.mxu0 0.0
        %643 = vmatprep.subr.mxu0 0.0
        %644 = vmatpush1.msra.mxu0 0.0
        %645 = vmatprep.subr.mxu0 0.0
        %646 = vmatpush1.msra.mxu0 0.0
        %647 = vmatprep.subr.mxu0 0.0
        %648 = vmatpush1.msra.mxu0 0.0
        %649 = vmatprep.subr.mxu0 0.0
        %650 = vmatpush1.msra.mxu0 0.0
        %651 = vmatprep.subr.mxu0 0.0
        %652 = vmatpush1.msra.mxu0 0.0
        %653 = vmatprep.subr.mxu0 0.0
        %654 = vmatpush1.msra.mxu0 0.0
        %655 = vmatprep.subr.mxu0 0.0
        %656 = vmatpush1.msra.mxu0 0.0
        %657 = vmatprep.subr.mxu0 0.0
        %658 = vmatpush1.msra.mxu0 0.0
        %659 = vmatprep.subr.mxu0 0.0
        %660 = vmatpush1.msra.mxu0 0.0
        %661 = vmatprep.subr.mxu0 0.0
        %662 = vmatpush1.msra.mxu0 0.0
        %663 = vmatprep.subr.mxu0 0.0
        %664 = vmatpush1.msra.mxu0 0.0
        %665 = vmatprep.subr.mxu0 0.0
        %666 = vmatpush1.msra.mxu0 0.0
        %667 = vmatprep.subr.mxu0 0.0
        %668 = vmatpush1.msra.mxu0 0.0
        %669 = vmatprep.subr.mxu0 0.0
        %670 = vmatpush1.msra.mxu0 0.0
        %671 = vmatprep.subr.mxu0 0.0
        %672 = vmatpush1.msra.mxu0 0.0
        %673 = vmatprep.mubr.f32.mxu0 0.0
        %674 = vmatmul.mubr.f32.gmra.mrb[0].mxu0 %v585
        %v675 = vpop.f32.mrb[0].mxu0
        %v676 = vadd.f32 0.0, %v675
        %v677 = vpop.f32.mrb[0].mxu0
        %678 = vmatprep.mubr.f32.mxu0 0.0
        %679 = vmatmul.mubr.f32.gmra.mrb[0].mxu0 %v590
        %v680 = vpop.f32.mrb[0].mxu0
        %v681 = vadd.f32 0.0, %v680
        %v682 = vpop.f32.mrb[0].mxu0
        %683 = vdwg.mxu0
        %v684 = vlaneseq
        %v685 = vshrl.u32 %v684, 7
        %v686 = vadd.s32 %v685, 8
        %v687 = vlaneseq
        %v688 = vand.u32 %v687, 127
        %vm689 = vcmp.lt.s32.totalorder %v685, 8
        %vm690 = vcmp.lt.s32.totalorder %v686, 8
        %vm691 = vcmp.lt.s32.totalorder %v688, 64
        %vm692 = vmxor %vm689, %vm691
        %vm693 = vmxor %vm690, %vm691
        %vm694 = vmxor %vm692, 1
        %vm695 = vmxor %vm693, 1
        %v696 = vsel %vm694, %v676, -3e+38
        %v697 = vsel %vm695, %v681, -3e+38
        %v698 = vcvt.s32.f32 %v688
        %v699 = vmul.f32 %v698, 1e-06
        %v700 = vsub.f32 %v696, %v699
        %v701 = vsub.f32 %v697, %v699
        %702 = vmax.xlane.f32.xlu0 %v700
        %v703 = vpop.xlane.xlu0 %702
        %704 = vmax.xlane.f32.xlu0 %v701
        %v705 = vpop.xlane.xlu0 %704
        %vm706 = vcmp.eq.f32.partialorder %v700, %v703
        %vm707 = vcmp.eq.f32.partialorder %v701, %v705
        %v708 = vsel %vm706, -3e+38, %v700
        %v709 = vsel %vm707, -3e+38, %v701
        %710 = vmax.xlane.f32.xlu0 %v708
        %v711 = vpop.xlane.xlu0 %710
        %712 = vmax.xlane.f32.xlu0 %v709
        %v713 = vpop.xlane.xlu0 %712
        %vm714 = vcmp.eq.f32.partialorder %v708, %v711
        %vm715 = vcmp.eq.f32.partialorder %v709, %v713
        %vm716 = vmor %vm706, %vm714
        %vm717 = vmor %vm707, %vm715
        %v718 = vsel %vm714, -3e+38, %v708
        %v719 = vsel %vm715, -3e+38, %v709
        %720 = vmax.xlane.f32.xlu0 %v718
        %v721 = vpop.xlane.xlu0 %720
        %722 = vmax.xlane.f32.xlu0 %v719
        %v723 = vpop.xlane.xlu0 %722
        %vm724 = vcmp.eq.f32.partialorder %v718, %v721
        %vm725 = vcmp.eq.f32.partialorder %v719, %v723
        %vm726 = vmor %vm716, %vm724
        %vm727 = vmor %vm717, %vm725
        %v728 = vsel %vm724, -3e+38, %v718
        %v729 = vsel %vm725, -3e+38, %v719
        %730 = vmax.xlane.f32.xlu0 %v728
        %v731 = vpop.xlane.xlu0 %730
        %732 = vmax.xlane.f32.xlu0 %v729
        %v733 = vpop.xlane.xlu0 %732
        %vm734 = vcmp.eq.f32.partialorder %v728, %v731
        %vm735 = vcmp.eq.f32.partialorder %v729, %v733
        %vm736 = vmor %vm726, %vm734
        %vm737 = vmor %vm727, %vm735
        %v738 = vsel %vm734, -3e+38, %v728
        %v739 = vsel %vm735, -3e+38, %v729
        %740 = vmax.xlane.f32.xlu0 %v738
        %v741 = vpop.xlane.xlu0 %740
        %742 = vmax.xlane.f32.xlu0 %v739
        %v743 = vpop.xlane.xlu0 %742
        %vm744 = vcmp.eq.f32.partialorder %v738, %v741
        %vm745 = vcmp.eq.f32.partialorder %v739, %v743
        %vm746 = vmor %vm736, %vm744
        %vm747 = vmor %vm737, %vm745
        %v748 = vsel %vm744, -3e+38, %v738
        %v749 = vsel %vm745, -3e+38, %v739
        %750 = vmax.xlane.f32.xlu0 %v748
        %v751 = vpop.xlane.xlu0 %750
        %752 = vmax.xlane.f32.xlu0 %v749
        %v753 = vpop.xlane.xlu0 %752
        %vm754 = vcmp.eq.f32.partialorder %v748, %v751
        %vm755 = vcmp.eq.f32.partialorder %v749, %v753
        %vm756 = vmor %vm746, %vm754
        %vm757 = vmor %vm747, %vm755
        %v758 = vsel %vm754, -3e+38, %v748
        %v759 = vsel %vm755, -3e+38, %v749
        %760 = vmax.xlane.f32.xlu0 %v758
        %v761 = vpop.xlane.xlu0 %760
        %762 = vmax.xlane.f32.xlu0 %v759
        %v763 = vpop.xlane.xlu0 %762
        %vm764 = vcmp.eq.f32.partialorder %v758, %v761
        %vm765 = vcmp.eq.f32.partialorder %v759, %v763
        %vm766 = vmor %vm756, %vm764
        %vm767 = vmor %vm757, %vm765
        %v768 = vsel %vm764, -3e+38, %v758
        %v769 = vsel %vm765, -3e+38, %v759
        %770 = vmax.xlane.f32.xlu0 %v768
        %v771 = vpop.xlane.xlu0 %770
        %772 = vmax.xlane.f32.xlu0 %v769
        %v773 = vpop.xlane.xlu0 %772
        %vm774 = vcmp.eq.f32.partialorder %v768, %v771
        %vm775 = vcmp.eq.f32.partialorder %v769, %v773
        %vm776 = vmor %vm766, %vm774
        %vm777 = vmor %vm767, %vm775
        %v778 = vmul.f32 %v676, 0.088388346
        %v779 = vmul.f32 %v681, 0.088388346
        %v780 = vsel %vm776, %v778, -3e+38
        %v781 = vsel %vm777, %v779, -3e+38
        %782 = vmax.xlane.f32.xlu0 %v780
        %v783 = vpop.xlane.xlu0 %782
        %784 = vmax.xlane.f32.xlu0 %v781
        %v785 = vpop.xlane.xlu0 %784
        %v786 = vsub.f32 %v780, %v783
        %v787 = vsub.f32 %v781, %v785
        %v788 = vmul.f32 %v786, 1.442695
        %v789 = vpow.pop %v788
        %v790 = vmul.f32 %v787, 1.442695
        %v791 = vpow.pop %v790
        %v792 = vsel %vm776, %v789, 0.0
        %v793 = vsel %vm777, %v791, 0.0
        %794 = vadd.xlane.f32.xlu0 %v792
        %v795 = vpop.xlane.xlu0 %794
        %796 = vadd.xlane.f32.xlu0 %v793
        %v797 = vpop.xlane.xlu0 %796
        %v798 = vrcp.pop %v795
        %v799 = vrcp.pop %v797
        %v800 = vmul.f32 %v792, %v798
        %v801 = vmul.f32 %v793, %v799
        %v802 = vpack.c.bf16 %v801, %v800
        %v803 = vld [vmem:[#allocation8 + $0x180] sm:$0xf]
        %v804 = vld [vmem:[#allocation8 + $0x184] sm:$0xf]
        %v805 = vld [vmem:[#allocation8 + $0x188] sm:$0xf]
        %v806 = vld [vmem:[#allocation8 + $0x18c] sm:$0xf]
        %v807 = vld [vmem:[#allocation8 + $0x190] sm:$0xf]
        %v808 = vld [vmem:[#allocation8 + $0x194] sm:$0xf]
        %v809 = vld [vmem:[#allocation8 + $0x198] sm:$0xf]
        %v810 = vld [vmem:[#allocation8 + $0x19c] sm:$0xf]
        %v811 = vld [vmem:[#allocation8 + $0x1a0] sm:$0xf]
        %v812 = vld [vmem:[#allocation8 + $0x1a4] sm:$0xf]
        %v813 = vld [vmem:[#allocation8 + $0x1a8] sm:$0xf]
        %v814 = vld [vmem:[#allocation8 + $0x1ac] sm:$0xf]
        %v815 = vld [vmem:[#allocation8 + $0x1b0] sm:$0xf]
        %v816 = vld [vmem:[#allocation8 + $0x1b4] sm:$0xf]
        %v817 = vld [vmem:[#allocation8 + $0x1b8] sm:$0xf]
        %v818 = vld [vmem:[#allocation8 + $0x1bc] sm:$0xf]
        %v835 = vunpack.c.l.b16 %v803
        %v836 = vunpack.c.l.b16 %v804
        %v837 = vunpack.c.l.b16 %v805
        %v838 = vunpack.c.l.b16 %v806
        %v839 = vunpack.c.l.b16 %v807
        %v840 = vunpack.c.l.b16 %v808
        %v841 = vunpack.c.l.b16 %v809
        %v842 = vunpack.c.l.b16 %v810
        %v843 = vunpack.c.l.b16 %v811
        %v844 = vunpack.c.l.b16 %v812
        %v845 = vunpack.c.l.b16 %v813
        %v846 = vunpack.c.l.b16 %v814
        %v847 = vunpack.c.l.b16 %v815
        %v848 = vunpack.c.l.b16 %v816
        %v849 = vunpack.c.l.b16 %v817
        %v850 = vunpack.c.l.b16 %v818
        %v851 = vpack.c.b16 %v836, %v835
        %v852 = vpack.c.b16 %v838, %v837
        %v853 = vpack.c.b16 %v840, %v839
        %v854 = vpack.c.b16 %v842, %v841
        %v855 = vpack.c.b16 %v844, %v843
        %v856 = vpack.c.b16 %v846, %v845
        %v857 = vpack.c.b16 %v848, %v847
        %v858 = vpack.c.b16 %v850, %v849
        %867 = vmatprep.subr.bf16.mxu0 0
        %868 = vmatpush1.bf16.msra.mxu0 %v851
        %869 = vmatprep.subr.bf16.mxu0 0
        %870 = vmatpush1.bf16.msra.mxu0 %v852
        %871 = vmatprep.subr.bf16.mxu0 0
        %872 = vmatpush1.bf16.msra.mxu0 %v853
        %873 = vmatprep.subr.bf16.mxu0 0
        %874 = vmatpush1.bf16.msra.mxu0 %v854
        %875 = vmatprep.subr.bf16.mxu0 0
        %876 = vmatpush1.bf16.msra.mxu0 %v855
        %877 = vmatprep.subr.bf16.mxu0 0
        %878 = vmatpush1.bf16.msra.mxu0 %v856
        %879 = vmatprep.subr.bf16.mxu0 0
        %880 = vmatpush1.bf16.msra.mxu0 %v857
        %881 = vmatprep.subr.bf16.mxu0 0
        %882 = vmatpush1.bf16.msra.mxu0 %v858
        %883 = vmatprep.subr.bf16.mxu0 0
        %884 = vmatpush1.bf16.msra.mxu0 0
        %885 = vmatprep.subr.bf16.mxu0 0
        %886 = vmatpush1.bf16.msra.mxu0 0
        %887 = vmatprep.subr.bf16.mxu0 0
        %888 = vmatpush1.bf16.msra.mxu0 0
        %889 = vmatprep.subr.bf16.mxu0 0
        %890 = vmatpush1.bf16.msra.mxu0 0
        %891 = vmatprep.subr.bf16.mxu0 0
        %892 = vmatpush1.bf16.msra.mxu0 0
        %893 = vmatprep.subr.bf16.mxu0 0
        %894 = vmatpush1.bf16.msra.mxu0 0
        %895 = vmatprep.subr.bf16.mxu0 0
        %896 = vmatpush1.bf16.msra.mxu0 0
        %897 = vmatprep.subr.bf16.mxu0 0
        %898 = vmatpush1.bf16.msra.mxu0 0
        %899 = vmatprep.mubr.bf16.mxu0 0
        %900 = vmatmul.mubr.bf16.gmra.mrb[0].mxu0 %v802
        %v901 = vpop.f32.mrb[0].mxu0
        %v902 = vadd.f32 0.0, %v901
        %v903 = vpop.f32.mrb[0].mxu0
        %v904 = vpop.f32.mrb[0].mxu0
        %v905 = vadd.f32 0.0, %v904
        %v906 = vpop.f32.mrb[0].mxu0
        %907 = vdwg.mxu0
        %v908 = vpack.c.bf16 0.0, %v406
        %v909 = vpack.c.bf16 0.0, %v902
        %v910 = vpack.c.bf16 %v483, 0.0
        %v911 = vpack.c.bf16 %v905, 0.0
        %v912 = vld [vmem:[#allocation8] sm:$0xf]
        %v913 = vld [vmem:[#allocation8 + $0x4] sm:$0xf]
        %v914 = vld [vmem:[#allocation8 + $0x8] sm:$0xf]
        %v915 = vld [vmem:[#allocation8 + $0xc] sm:$0xf]
        %v916 = vld [vmem:[#allocation8 + $0x10] sm:$0xf]
        %v917 = vld [vmem:[#allocation8 + $0x14] sm:$0xf]
        %v918 = vld [vmem:[#allocation8 + $0x18] sm:$0xf]
        %v919 = vld [vmem:[#allocation8 + $0x1c] sm:$0xf]
        %v920 = vld [vmem:[#allocation8 + $0x20] sm:$0xf]
        %v921 = vld [vmem:[#allocation8 + $0x24] sm:$0xf]
        %v922 = vld [vmem:[#allocation8 + $0x28] sm:$0xf]
        %v923 = vld [vmem:[#allocation8 + $0x2c] sm:$0xf]
        %v924 = vld [vmem:[#allocation8 + $0x30] sm:$0xf]
        %v925 = vld [vmem:[#allocation8 + $0x34] sm:$0xf]
        %v926 = vld [vmem:[#allocation8 + $0x38] sm:$0xf]
        %v927 = vld [vmem:[#allocation8 + $0x3c] sm:$0xf]
        %v928 = vld [vmem:[#allocation8 + $0x40] sm:$0xf]
        %v929 = vld [vmem:[#allocation8 + $0x44] sm:$0xf]
        %v930 = vld [vmem:[#allocation8 + $0x48] sm:$0xf]
        %v931 = vld [vmem:[#allocation8 + $0x4c] sm:$0xf]
        %v932 = vld [vmem:[#allocation8 + $0x50] sm:$0xf]
        %v933 = vld [vmem:[#allocation8 + $0x54] sm:$0xf]
        %v934 = vld [vmem:[#allocation8 + $0x58] sm:$0xf]
        %v935 = vld [vmem:[#allocation8 + $0x5c] sm:$0xf]
        %v936 = vld [vmem:[#allocation8 + $0x60] sm:$0xf]
        %v937 = vld [vmem:[#allocation8 + $0x64] sm:$0xf]
        %v938 = vld [vmem:[#allocation8 + $0x68] sm:$0xf]
        %v939 = vld [vmem:[#allocation8 + $0x6c] sm:$0xf]
        %v940 = vld [vmem:[#allocation8 + $0x70] sm:$0xf]
        %v941 = vld [vmem:[#allocation8 + $0x74] sm:$0xf]
        %v942 = vld [vmem:[#allocation8 + $0x78] sm:$0xf]
        %v943 = vld [vmem:[#allocation8 + $0x7c] sm:$0xf]
        %v944 = vld [vmem:[#allocation8 + $0x80] sm:$0xf]
        %v945 = vld [vmem:[#allocation8 + $0x84] sm:$0xf]
        %v946 = vld [vmem:[#allocation8 + $0x88] sm:$0xf]
        %v947 = vld [vmem:[#allocation8 + $0x8c] sm:$0xf]
        %v948 = vld [vmem:[#allocation8 + $0x90] sm:$0xf]
        %v949 = vld [vmem:[#allocation8 + $0x94] sm:$0xf]
        %v950 = vld [vmem:[#allocation8 + $0x98] sm:$0xf]
        %v951 = vld [vmem:[#allocation8 + $0x9c] sm:$0xf]
        %v952 = vld [vmem:[#allocation8 + $0xa0] sm:$0xf]
        %v953 = vld [vmem:[#allocation8 + $0xa4] sm:$0xf]
        %v954 = vld [vmem:[#allocation8 + $0xa8] sm:$0xf]
        %v955 = vld [vmem:[#allocation8 + $0xac] sm:$0xf]
        %v956 = vld [vmem:[#allocation8 + $0xb0] sm:$0xf]
        %v957 = vld [vmem:[#allocation8 + $0xb4] sm:$0xf]
        %v958 = vld [vmem:[#allocation8 + $0xb8] sm:$0xf]
        %v959 = vld [vmem:[#allocation8 + $0xbc] sm:$0xf]
        %v960 = vld [vmem:[#allocation8 + $0xc0] sm:$0xf]
        %v961 = vld [vmem:[#allocation8 + $0xc4] sm:$0xf]
        %v962 = vld [vmem:[#allocation8 + $0xc8] sm:$0xf]
        %v963 = vld [vmem:[#allocation8 + $0xcc] sm:$0xf]
        %v964 = vld [vmem:[#allocation8 + $0xd0] sm:$0xf]
        %v965 = vld [vmem:[#allocation8 + $0xd4] sm:$0xf]
        %v966 = vld [vmem:[#allocation8 + $0xd8] sm:$0xf]
        %v967 = vld [vmem:[#allocation8 + $0xdc] sm:$0xf]
        %v968 = vld [vmem:[#allocation8 + $0xe0] sm:$0xf]
        %v969 = vld [vmem:[#allocation8 + $0xe4] sm:$0xf]
        %v970 = vld [vmem:[#allocation8 + $0xe8] sm:$0xf]
        %v971 = vld [vmem:[#allocation8 + $0xec] sm:$0xf]
        %v972 = vld [vmem:[#allocation8 + $0xf0] sm:$0xf]
        %v973 = vld [vmem:[#allocation8 + $0xf4] sm:$0xf]
        %v974 = vld [vmem:[#allocation8 + $0xf8] sm:$0xf]
        %v975 = vld [vmem:[#allocation8 + $0xfc] sm:$0xf]
        %v1040 = vunpack.c.l.b16 %v912
        %v1041 = vunpack.c.l.b16 %v913
        %v1042 = vunpack.c.l.b16 %v914
        %v1043 = vunpack.c.l.b16 %v915
        %v1044 = vunpack.c.l.b16 %v916
        %v1045 = vunpack.c.l.b16 %v917
        %v1046 = vunpack.c.l.b16 %v918
        %v1047 = vunpack.c.l.b16 %v919
        %v1048 = vunpack.c.l.b16 %v920
        %v1049 = vunpack.c.l.b16 %v921
        %v1050 = vunpack.c.l.b16 %v922
        %v1051 = vunpack.c.l.b16 %v923
        %v1052 = vunpack.c.l.b16 %v924
        %v1053 = vunpack.c.l.b16 %v925
        %v1054 = vunpack.c.l.b16 %v926
        %v1055 = vunpack.c.l.b16 %v927
        %v1056 = vunpack.c.l.b16 %v928
        %v1057 = vunpack.c.l.b16 %v929
        %v1058 = vunpack.c.l.b16 %v930
        %v1059 = vunpack.c.l.b16 %v931
        %v1060 = vunpack.c.l.b16 %v932
        %v1061 = vunpack.c.l.b16 %v933
        %v1062 = vunpack.c.l.b16 %v934
        %v1063 = vunpack.c.l.b16 %v935
        %v1064 = vunpack.c.l.b16 %v936
        %v1065 = vunpack.c.l.b16 %v937
        %v1066 = vunpack.c.l.b16 %v938
        %v1067 = vunpack.c.l.b16 %v939
        %v1068 = vunpack.c.l.b16 %v940
        %v1069 = vunpack.c.l.b16 %v941
        %v1070 = vunpack.c.l.b16 %v942
        %v1071 = vunpack.c.l.b16 %v943
        %v1072 = vunpack.c.l.b16 %v944
        %v1073 = vunpack.c.l.b16 %v945
        %v1074 = vunpack.c.l.b16 %v946
        %v1075 = vunpack.c.l.b16 %v947
        %v1076 = vunpack.c.l.b16 %v948
        %v1077 = vunpack.c.l.b16 %v949
        %v1078 = vunpack.c.l.b16 %v950
        %v1079 = vunpack.c.l.b16 %v951
        %v1080 = vunpack.c.l.b16 %v952
        %v1081 = vunpack.c.l.b16 %v953
        %v1082 = vunpack.c.l.b16 %v954
        %v1083 = vunpack.c.l.b16 %v955
        %v1084 = vunpack.c.l.b16 %v956
        %v1085 = vunpack.c.l.b16 %v957
        %v1086 = vunpack.c.l.b16 %v958
        %v1087 = vunpack.c.l.b16 %v959
        %v1088 = vunpack.c.l.b16 %v960
        %v1089 = vunpack.c.l.b16 %v961
        %v1090 = vunpack.c.l.b16 %v962
        %v1091 = vunpack.c.l.b16 %v963
        %v1092 = vunpack.c.l.b16 %v964
        %v1093 = vunpack.c.l.b16 %v965
        %v1094 = vunpack.c.l.b16 %v966
        %v1095 = vunpack.c.l.b16 %v967
        %v1096 = vunpack.c.l.b16 %v968
        %v1097 = vunpack.c.l.b16 %v969
        %v1098 = vunpack.c.l.b16 %v970
        %v1099 = vunpack.c.l.b16 %v971
        %v1100 = vunpack.c.l.b16 %v972
        %v1101 = vunpack.c.l.b16 %v973
        %v1102 = vunpack.c.l.b16 %v974
        %v1103 = vunpack.c.l.b16 %v975
        %v1104 = vpack.c.b16 %v1041, %v1040
        %v1105 = vpack.c.b16 %v1043, %v1042
        %v1106 = vpack.c.b16 %v1045, %v1044
        %v1107 = vpack.c.b16 %v1047, %v1046
        %v1108 = vpack.c.b16 %v1049, %v1048
        %v1109 = vpack.c.b16 %v1051, %v1050
        %v1110 = vpack.c.b16 %v1053, %v1052
        %v1111 = vpack.c.b16 %v1055, %v1054
        %v1112 = vpack.c.b16 %v1057, %v1056
        %v1113 = vpack.c.b16 %v1059, %v1058
        %v1114 = vpack.c.b16 %v1061, %v1060
        %v1115 = vpack.c.b16 %v1063, %v1062
        %v1116 = vpack.c.b16 %v1065, %v1064
        %v1117 = vpack.c.b16 %v1067, %v1066
        %v1118 = vpack.c.b16 %v1069, %v1068
        %v1119 = vpack.c.b16 %v1071, %v1070
        %v1120 = vpack.c.b16 %v1073, %v1072
        %v1121 = vpack.c.b16 %v1075, %v1074
        %v1122 = vpack.c.b16 %v1077, %v1076
        %v1123 = vpack.c.b16 %v1079, %v1078
        %v1124 = vpack.c.b16 %v1081, %v1080
        %v1125 = vpack.c.b16 %v1083, %v1082
        %v1126 = vpack.c.b16 %v1085, %v1084
        %v1127 = vpack.c.b16 %v1087, %v1086
        %v1128 = vpack.c.b16 %v1089, %v1088
        %v1129 = vpack.c.b16 %v1091, %v1090
        %v1130 = vpack.c.b16 %v1093, %v1092
        %v1131 = vpack.c.b16 %v1095, %v1094
        %v1132 = vpack.c.b16 %v1097, %v1096
        %v1133 = vpack.c.b16 %v1099, %v1098
        %v1134 = vpack.c.b16 %v1101, %v1100
        %v1135 = vpack.c.b16 %v1103, %v1102
        %1168 = vmatprep.subr.bf16.mxu0 0
        %1169 = vmatpush1.bf16.msra.mxu0 %v1104
        %1170 = vmatprep.subr.bf16.mxu0 0
        %1171 = vmatpush1.bf16.msra.mxu0 %v1105
        %1172 = vmatprep.subr.bf16.mxu0 0
        %1173 = vmatpush1.bf16.msra.mxu0 %v1106
        %1174 = vmatprep.subr.bf16.mxu0 0
        %1175 = vmatpush1.bf16.msra.mxu0 %v1107
        %1176 = vmatprep.subr.bf16.mxu0 0
        %1177 = vmatpush1.bf16.msra.mxu0 %v1108
        %1178 = vmatprep.subr.bf16.mxu0 0
        %1179 = vmatpush1.bf16.msra.mxu0 %v1109
        %1180 = vmatprep.subr.bf16.mxu0 0
        %1181 = vmatpush1.bf16.msra.mxu0 %v1110
        %1182 = vmatprep.subr.bf16.mxu0 0
        %1183 = vmatpush1.bf16.msra.mxu0 %v1111
        %1184 = vmatprep.subr.bf16.mxu0 0
        %1185 = vmatpush1.bf16.msra.mxu0 %v1112
        %1186 = vmatprep.subr.bf16.mxu0 0
        %1187 = vmatpush1.bf16.msra.mxu0 %v1113
        %1188 = vmatprep.subr.bf16.mxu0 0
        %1189 = vmatpush1.bf16.msra.mxu0 %v1114
        %1190 = vmatprep.subr.bf16.mxu0 0
        %1191 = vmatpush1.bf16.msra.mxu0 %v1115
        %1192 = vmatprep.subr.bf16.mxu0 0
        %1193 = vmatpush1.bf16.msra.mxu0 %v1116
        %1194 = vmatprep.subr.bf16.mxu0 0
        %1195 = vmatpush1.bf16.msra.mxu0 %v1117
        %1196 = vmatprep.subr.bf16.mxu0 0
        %1197 = vmatpush1.bf16.msra.mxu0 %v1118
        %1198 = vmatprep.subr.bf16.mxu0 0
        %1199 = vmatpush1.bf16.msra.mxu0 %v1119
        %1200 = vmatprep.mubr.bf16.mxu0 %v909
        %1201 = vmatmul.mubr.bf16.gmra.mrb[0].mxu0 %v908
        %v1202 = vpop.f32.mrb[0].mxu0
        %v1203 = vadd.f32 %v327, %v1202
        %v1204 = vpop.f32.mrb[0].mxu0
        %v1205 = vpop.f32.mrb[0].mxu0
        %v1206 = vadd.f32 %v328, %v1205
        %v1207 = vpop.f32.mrb[0].mxu0
        %1208 = vdwg.mxu0
        %1209 = vmatprep.subr.bf16.mxu0 0
        %1210 = vmatpush1.bf16.msra.mxu0 %v1120
        %1211 = vmatprep.subr.bf16.mxu0 0
        %1212 = vmatpush1.bf16.msra.mxu0 %v1121
        %1213 = vmatprep.subr.bf16.mxu0 0
        %1214 = vmatpush1.bf16.msra.mxu0 %v1122
        %1215 = vmatprep.subr.bf16.mxu0 0
        %1216 = vmatpush1.bf16.msra.mxu0 %v1123
        %1217 = vmatprep.subr.bf16.mxu0 0
        %1218 = vmatpush1.bf16.msra.mxu0 %v1124
        %1219 = vmatprep.subr.bf16.mxu0 0
        %1220 = vmatpush1.bf16.msra.mxu0 %v1125
        %1221 = vmatprep.subr.bf16.mxu0 0
        %1222 = vmatpush1.bf16.msra.mxu0 %v1126
        %1223 = vmatprep.subr.bf16.mxu0 0
        %1224 = vmatpush1.bf16.msra.mxu0 %v1127
        %1225 = vmatprep.subr.bf16.mxu0 0
        %1226 = vmatpush1.bf16.msra.mxu0 %v1128
        %1227 = vmatprep.subr.bf16.mxu0 0
        %1228 = vmatpush1.bf16.msra.mxu0 %v1129
        %1229 = vmatprep.subr.bf16.mxu0 0
        %1230 = vmatpush1.bf16.msra.mxu0 %v1130
        %1231 = vmatprep.subr.bf16.mxu0 0
        %1232 = vmatpush1.bf16.msra.mxu0 %v1131
        %1233 = vmatprep.subr.bf16.mxu0 0
        %1234 = vmatpush1.bf16.msra.mxu0 %v1132
        %1235 = vmatprep.subr.bf16.mxu0 0
        %1236 = vmatpush1.bf16.msra.mxu0 %v1133
        %1237 = vmatprep.subr.bf16.mxu0 0
        %1238 = vmatpush1.bf16.msra.mxu0 %v1134
        %1239 = vmatprep.subr.bf16.mxu0 0
        %1240 = vmatpush1.bf16.msra.mxu0 %v1135
        %1241 = vmatprep.mubr.bf16.mxu0 %v911
        %1242 = vmatmul.mubr.bf16.gmra.mrb[0].mxu0 %v910
        %v1243 = vpop.f32.mrb[0].mxu0
        %v1244 = vadd.f32 %v1203, %v1243
        %v1245 = vpop.f32.mrb[0].mxu0
        %v1246 = vpop.f32.mrb[0].mxu0
        %v1247 = vadd.f32 %v1206, %v1246
        %v1248 = vpop.f32.mrb[0].mxu0
        %1249 = vdwg.mxu0
        %v1250 = vmax.f32 %v1244, 0.0
        %v1251 = vmax.f32 %v1247, 0.0
        %v1252 = vpack.c.bf16 0.0, %v1250
        %v1253 = vpack.c.bf16 %v1251, 0.0
        %v1254 = vld [vmem:[#allocation8 + $0x100] sm:$0xf]
        %v1255 = vld [vmem:[#allocation8 + $0x104] sm:$0xf]
        %v1256 = vld [vmem:[#allocation8 + $0x108] sm:$0xf]
        %v1257 = vld [vmem:[#allocation8 + $0x10c] sm:$0xf]
        %v1258 = vld [vmem:[#allocation8 + $0x110] sm:$0xf]
        %v1259 = vld [vmem:[#allocation8 + $0x114] sm:$0xf]
        %v1260 = vld [vmem:[#allocation8 + $0x118] sm:$0xf]
        %v1261 = vld [vmem:[#allocation8 + $0x11c] sm:$0xf]
        %v1262 = vld [vmem:[#allocation8 + $0x120] sm:$0xf]
        %v1263 = vld [vmem:[#allocation8 + $0x124] sm:$0xf]
        %v1264 = vld [vmem:[#allocation8 + $0x128] sm:$0xf]
        %v1265 = vld [vmem:[#allocation8 + $0x12c] sm:$0xf]
        %v1266 = vld [vmem:[#allocation8 + $0x130] sm:$0xf]
        %v1267 = vld [vmem:[#allocation8 + $0x134] sm:$0xf]
        %v1268 = vld [vmem:[#allocation8 + $0x138] sm:$0xf]
        %v1269 = vld [vmem:[#allocation8 + $0x13c] sm:$0xf]
        %v1270 = vld [vmem:[#allocation8 + $0x140] sm:$0xf]
        %v1271 = vld [vmem:[#allocation8 + $0x144] sm:$0xf]
        %v1272 = vld [vmem:[#allocation8 + $0x148] sm:$0xf]
        %v1273 = vld [vmem:[#allocation8 + $0x14c] sm:$0xf]
        %v1274 = vld [vmem:[#allocation8 + $0x150] sm:$0xf]
        %v1275 = vld [vmem:[#allocation8 + $0x154] sm:$0xf]
        %v1276 = vld [vmem:[#allocation8 + $0x158] sm:$0xf]
        %v1277 = vld [vmem:[#allocation8 + $0x15c] sm:$0xf]
        %v1278 = vld [vmem:[#allocation8 + $0x160] sm:$0xf]
        %v1279 = vld [vmem:[#allocation8 + $0x164] sm:$0xf]
        %v1280 = vld [vmem:[#allocation8 + $0x168] sm:$0xf]
        %v1281 = vld [vmem:[#allocation8 + $0x16c] sm:$0xf]
        %v1282 = vld [vmem:[#allocation8 + $0x170] sm:$0xf]
        %v1283 = vld [vmem:[#allocation8 + $0x174] sm:$0xf]
        %v1284 = vld [vmem:[#allocation8 + $0x178] sm:$0xf]
        %v1285 = vld [vmem:[#allocation8 + $0x17c] sm:$0xf]
        %v1318 = vunpack.c.l.b16 %v1254
        %v1319 = vunpack.c.l.b16 %v1255
        %v1320 = vunpack.c.l.b16 %v1256
        %v1321 = vunpack.c.l.b16 %v1257
        %v1322 = vunpack.c.l.b16 %v1258
        %v1323 = vunpack.c.l.b16 %v1259
        %v1324 = vunpack.c.l.b16 %v1260
        %v1325 = vunpack.c.l.b16 %v1261
        %v1326 = vunpack.c.l.b16 %v1262
        %v1327 = vunpack.c.l.b16 %v1263
        %v1328 = vunpack.c.l.b16 %v1264
        %v1329 = vunpack.c.l.b16 %v1265
        %v1330 = vunpack.c.l.b16 %v1266
        %v1331 = vunpack.c.l.b16 %v1267
        %v1332 = vunpack.c.l.b16 %v1268
        %v1333 = vunpack.c.l.b16 %v1269
        %v1334 = vunpack.c.l.b16 %v1270
        %v1335 = vunpack.c.l.b16 %v1271
        %v1336 = vunpack.c.l.b16 %v1272
        %v1337 = vunpack.c.l.b16 %v1273
        %v1338 = vunpack.c.l.b16 %v1274
        %v1339 = vunpack.c.l.b16 %v1275
        %v1340 = vunpack.c.l.b16 %v1276
        %v1341 = vunpack.c.l.b16 %v1277
        %v1342 = vunpack.c.l.b16 %v1278
        %v1343 = vunpack.c.l.b16 %v1279
        %v1344 = vunpack.c.l.b16 %v1280
        %v1345 = vunpack.c.l.b16 %v1281
        %v1346 = vunpack.c.l.b16 %v1282
        %v1347 = vunpack.c.l.b16 %v1283
        %v1348 = vunpack.c.l.b16 %v1284
        %v1349 = vunpack.c.l.b16 %v1285
        %v1350 = vpack.c.b16 %v1319, %v1318
        %v1351 = vpack.c.b16 %v1321, %v1320
        %v1352 = vpack.c.b16 %v1323, %v1322
        %v1353 = vpack.c.b16 %v1325, %v1324
        %v1354 = vpack.c.b16 %v1327, %v1326
        %v1355 = vpack.c.b16 %v1329, %v1328
        %v1356 = vpack.c.b16 %v1331, %v1330
        %v1357 = vpack.c.b16 %v1333, %v1332
        %v1358 = vpack.c.b16 %v1335, %v1334
        %v1359 = vpack.c.b16 %v1337, %v1336
        %v1360 = vpack.c.b16 %v1339, %v1338
        %v1361 = vpack.c.b16 %v1341, %v1340
        %v1362 = vpack.c.b16 %v1343, %v1342
        %v1363 = vpack.c.b16 %v1345, %v1344
        %v1364 = vpack.c.b16 %v1347, %v1346
        %v1365 = vpack.c.b16 %v1349, %v1348
        %1382 = vmatprep.subr.bf16.mxu0 0
        %1383 = vmatpush1.bf16.msra.mxu0 %v1350
        %1384 = vmatprep.subr.bf16.mxu0 0
        %1385 = vmatpush1.bf16.msra.mxu0 %v1351
        %1386 = vmatprep.subr.bf16.mxu0 0
        %1387 = vmatpush1.bf16.msra.mxu0 %v1352
        %1388 = vmatprep.subr.bf16.mxu0 0
        %1389 = vmatpush1.bf16.msra.mxu0 %v1353
        %1390 = vmatprep.subr.bf16.mxu0 0
        %1391 = vmatpush1.bf16.msra.mxu0 %v1354
        %1392 = vmatprep.subr.bf16.mxu0 0
        %1393 = vmatpush1.bf16.msra.mxu0 %v1355
        %1394 = vmatprep.subr.bf16.mxu0 0
        %1395 = vmatpush1.bf16.msra.mxu0 %v1356
        %1396 = vmatprep.subr.bf16.mxu0 0
        %1397 = vmatpush1.bf16.msra.mxu0 %v1357
        %1398 = vmatprep.subr.bf16.mxu0 0
        %1399 = vmatpush1.bf16.msra.mxu0 %v1358
        %1400 = vmatprep.subr.bf16.mxu0 0
        %1401 = vmatpush1.bf16.msra.mxu0 %v1359
        %1402 = vmatprep.subr.bf16.mxu0 0
        %1403 = vmatpush1.bf16.msra.mxu0 %v1360
        %1404 = vmatprep.subr.bf16.mxu0 0
        %1405 = vmatpush1.bf16.msra.mxu0 %v1361
        %1406 = vmatprep.subr.bf16.mxu0 0
        %1407 = vmatpush1.bf16.msra.mxu0 %v1362
        %1408 = vmatprep.subr.bf16.mxu0 0
        %1409 = vmatpush1.bf16.msra.mxu0 %v1363
        %1410 = vmatprep.subr.bf16.mxu0 0
        %1411 = vmatpush1.bf16.msra.mxu0 %v1364
        %1412 = vmatprep.subr.bf16.mxu0 0
        %1413 = vmatpush1.bf16.msra.mxu0 %v1365
        %1414 = vmatprep.mubr.bf16.mxu0 %v1253
        %1415 = vmatmul.mubr.bf16.gmra.mrb[0].mxu0 %v1252
        %v1416 = vpop.f32.mrb[0].mxu0
        %v1417 = vadd.f32 %v329, %v1416
        %v1418 = vpop.f32.mrb[0].mxu0
        %v1419 = vpop.f32.mrb[0].mxu0
        %v1420 = vadd.f32 %v330, %v1419
        %v1421 = vpop.f32.mrb[0].mxu0
        %1422 = vdwg.mxu0
        %v1423 = vmul.f32 %v1417, %v1417
        %v1424 = vmul.f32 %v1420, %v1420
        %1425 = vadd.xlane.f32.xlu0 %v1423
        %v1426 = vpop.xlane.xlu0 %1425
        %1427 = vadd.xlane.f32.xlu0 %v1424
        %v1428 = vpop.xlane.xlu0 %1427
        %v1429 = vmax.f32 %v1426, 1e-24
        %v1430 = vmax.f32 %v1428, 1e-24
        %v1431 = vrsqrt.pop %v1429
        %v1432 = vrsqrt.pop %v1430
        %v1433 = vmul.f32 %v1417, %v1431
        %v1434 = vmul.f32 %v1420, %v1432
        %v1435 = vmul.f32 %v1433, %v1434
        %1436 = vadd.xlane.f32.xlu0 %v1435
        %v1437 = vpop.xlane.xlu0 %1436
        %v1438 = vadd.f32 %v1437, 1.0
        %v1439 = vmul.f32 %v1438, 0.5
        %1440 = vst [vmem:[%s319] sm:$0xff] %v1439
        %s1441 = sand.u32 %s149, 1
        %s1442 = scalar_lea.sflag [#allocation4], %s1441
        %s1443 = sand.u32 %s149, 1
        %s1444 = smul.addr %s1443, 8
        %s1445 = scalar_lea.vmem [#allocation11], %s1444
        // Predicated region
        $region61: #{tpu_custom_call.1} parent=39 // pred_check
          %p1446 = pneg %p159
        $region62: #{tpu_custom_call.1} parent=39 // pred_check_branch
          %1448 = sbr.rel (%p1446) target = $region64
        $region63: #{tpu_custom_call.1} parent=39 // pred_region
          %s1450 = ssub.s32 128, 128
          %1451 = vsyncadd %s1442, %s1450
          %s1452 = smul.addr %s26, 128
          %s1453 = scalar_lea.hbm %s5, %s1452
          %s1455 = sshll.u32 %s1445, 4
          %s1456 = int_to_ptr.vmem [resolvable:$true] %s1455
          %1458 = dma.vmem_to_hbm [thread:$0]  %s1456, 128, %s1453, %s1442
        $region64: #{tpu_custom_call.1} parent=39 // pred_fallthru
          _
      $region40: #{tpu_custom_call.1} parent=5 // pred_fallthru
        _
      %p1459 = scmp.le.s32.totalorder 2, %s21
      // Predicated region
      $region65: #{tpu_custom_call.1} parent=5 // pred_check
        %p1460 = pneg %p1459
      $region66: #{tpu_custom_call.1} parent=5 // pred_check_branch
        %1462 = sbr.rel (%p1460) target = $region68
      $region67: #{tpu_custom_call.1} parent=5 // pred_region
        %s1463 = ssub.s32 %s21, 2
        // Predicated region
        $region69: #{tpu_custom_call.1} parent=67 // pred_check
          %p1464 = pneg %p165
        $region70: #{tpu_custom_call.1} parent=67 // pred_check_branch
          %1466 = sbr.rel (%p1464) target = $region72
        $region71: #{tpu_custom_call.1} parent=67 // pred_region
          %s1467 = sand.u32 %s150, 1
          %s1468 = scalar_lea.sflag [#allocation4], %s1467
          %s1469 = sand.u32 %s150, 1
          %s1470 = smul.addr %s1469, 8
          %s1471 = scalar_lea.vmem [#allocation11], %s1470
          %1472 = dma.done %s1468, 128
        $region72: #{tpu_custom_call.1} parent=67 // pred_fallthru
          _
      $region68: #{tpu_custom_call.1} parent=5 // pred_fallthru
        _
    $region6: #{tpu_custom_call.1} parent=1 // loop_footer
      %s25 = sadd.s32 1, %s21
    $region7: #{tpu_custom_call.1} parent=1 // loop_footer_branch
      %20 = sbr.rel target = $region3
    $region8: #{tpu_custom_call.1} parent=1 // loop_exit
      _
    %1473 = vsyncpa [#allocation3], 1
    %s1474 = scalar_lea.sflag [#allocation3], 1
    %1475 = vsyncpa %s1474, 1
    %1476 = vsyncpa [#allocation6], 1
    %s1477 = scalar_lea.sflag [#allocation6], 1
    %1478 = vsyncpa %s1477, 1
    %1479 = vsyncpa [#allocation9], 1
    %1480 = vsyncpa [#allocation4], 1
    %s1481 = scalar_lea.sflag [#allocation4], 1
    %1482 = vsyncpa %s1481, 1

</llo_original>
